<compile_context>
chip_gen: v6e
topology: v6e:2x2x1
jax: 0.10.0
libtpu: 0.0.40
codegen_flags: <defaults>
</compile_context>

<pallas_src>
import jax
import jax.numpy as jnp
from jax import lax
from jax.experimental import pallas as pl
from jax.experimental.pallas import tpu as pltpu
import numpy as np


def _bilstm_fc_kernel(x_ref,        # (T, B, D_in)
                      wih_ref,      # (D_in, 8H)  interleaved gate order
                      b_ref,        # (1, 8H)     combined b_ih + b_hh, both dirs
                      whh_ref,      # (2H, 8H)    block-diagonal recurrent weight
                      fmask_ref,    # (1, 8H)     1.0 on forward-direction columns
                      wfcf_ref,     # (H, D_out)
                      wfcr_ref,     # (H, D_out)
                      bfc_ref,      # (1, D_out)
                      out_ref,      # (T, B, D_out)
                      pre_ref,      # scratch (T, B, 8H)  pre-computed input gates
                      hf_ref,       # scratch (T, B, H)   forward hidden states
                      hr_ref):      # scratch (T, B, H)   reverse hidden states
    T, B, D = x_ref.shape
    H = hf_ref.shape[2]

    # ---- Prologue: one bulk input projection for both directions (bias folded).
    x2d = x_ref[...].reshape(T * B, D)
    pre = jnp.dot(x2d, wih_ref[...], preferred_element_type=jnp.float32) + b_ref[...]
    pre_ref[...] = pre.reshape(T, B, 8 * H)

    whh = whh_ref[...]        # loaded once, (2H, 8H)
    fmask = fmask_ref[...]    # (1, 8H), broadcasts over the batch rows

    # ---- Fused forward + reverse recurrence.
    # Carry layout along lanes: h = [h_f | h_r] (B, 2H), c = [c_f | c_r] (B, 2H).
    def step(s, carry):
        h, c = carry
        t_r = T - 1 - s
        pre_f = pre_ref[s]      # forward pre-gates valid on fwd columns @ time s
        pre_r = pre_ref[t_r]    # reverse pre-gates valid on rev columns @ time T-1-s
        pre_t = pre_r + fmask * (pre_f - pre_r)          # merge fwd/rev columns
        gates = pre_t + jnp.dot(h, whh, preferred_element_type=jnp.float32)
        i = jax.nn.sigmoid(gates[:, 0:2 * H])            # [i_f | i_r]
        f = jax.nn.sigmoid(gates[:, 2 * H:4 * H])        # [f_f | f_r]
        g = jnp.tanh(gates[:, 4 * H:6 * H])              # [g_f | g_r]
        o = jax.nn.sigmoid(gates[:, 6 * H:8 * H])        # [o_f | o_r]
        c_new = f * c + i * g
        h_new = o * jnp.tanh(c_new)
        hf_ref[s] = h_new[:, 0:H]
        hr_ref[t_r] = h_new[:, H:2 * H]
        return (h_new, c_new)

    h0 = jnp.zeros((B, 2 * H), jnp.float32)
    c0 = jnp.zeros((B, 2 * H), jnp.float32)
    lax.fori_loop(0, T, step, (h0, c0), unroll=True)

    # ---- Epilogue: single bulk FC over all timesteps.
    y = (jnp.dot(hf_ref[...].reshape(T * B, H), wfcf_ref[...],
                 preferred_element_type=jnp.float32)
         + jnp.dot(hr_ref[...].reshape(T * B, H), wfcr_ref[...],
                   preferred_element_type=jnp.float32)
         + bfc_ref[...])
    out_ref[...] = y.reshape(T, B, out_ref.shape[2])


def _interleave_gate_cols(wf, wr, H):
    """(..., 4H), (..., 4H) -> (..., 8H) in order [i_f,i_r,f_f,f_r,g_f,g_r,o_f,o_r]."""
    lead = wf.shape[:-1]
    wf4 = wf.reshape(lead + (4, H))
    wr4 = wr.reshape(lead + (4, H))
    return jnp.stack([wf4, wr4], axis=-2).reshape(lead + (8 * H,))


@jax.jit
def rna_pair_lstm_forward(x, params):
    """x: (B, T, D_in) float32 -> (B, T, D_out) float32."""
    B, T, D = x.shape
    H = params["whh_f"].shape[0]
    D_out = params["wfc"].shape[1]

    x_tbd = jnp.transpose(x, (1, 0, 2)).astype(jnp.float32)              # (T, B, D)

    # Interleaved-gate input weights / biases for both directions.
    wih_cat = _interleave_gate_cols(params["wih_f"], params["wih_r"], H)   # (D, 8H)
    b_cat = _interleave_gate_cols(params["b_f"], params["b_r"], H)         # (1, 8H)

    # Block-diagonal recurrent weight: rows 0:H act on h_f, rows H:2H on h_r.
    zero_h = jnp.zeros_like(params["whh_f"])
    whh_blk = jnp.concatenate(
        [_interleave_gate_cols(params["whh_f"], zero_h, H),
         _interleave_gate_cols(zero_h, params["whh_r"], H)],
        axis=0)                                                            # (2H, 8H)

    # Mask selecting the forward-direction gate columns (H-wide alternating blocks).
    fmask = jnp.tile(
        jnp.concatenate([jnp.ones((1, H), jnp.float32),
                         jnp.zeros((1, H), jnp.float32)], axis=1), (1, 4))  # (1, 8H)

    wfc_f = params["wfc"][:H, :]
    wfc_r = params["wfc"][H:, :]

    vmem = pl.BlockSpec(memory_space=pltpu.MemorySpace.VMEM)
    out_tbd = pl.pallas_call(
        _bilstm_fc_kernel,
        out_shape=jax.ShapeDtypeStruct((T, B, D_out), jnp.float32),
        in_specs=[vmem] * 8,
        out_specs=vmem,
        scratch_shapes=[
            pltpu.VMEM((T, B, 8 * H), jnp.float32),   # pre-computed input gates
            pltpu.VMEM((T, B, H), jnp.float32),       # forward hidden states
            pltpu.VMEM((T, B, H), jnp.float32),       # reverse hidden states
        ],
        compiler_params=pltpu.CompilerParams(vmem_limit_bytes=64 * 1024 * 1024),
    )(x_tbd, wih_cat, b_cat, whh_blk, fmask, wfc_f, wfc_r, params["bfc"])

    return jnp.transpose(out_tbd, (1, 0, 2))


def init_params(key, input_dim, hidden_dim, output_dim):
    """Deterministic synthetic init, PyTorch-style uniform(-1/sqrt(H), 1/sqrt(H))."""
    k = 1.0 / np.sqrt(hidden_dim)
    keys = jax.random.split(key, 9)
    u = lambda kk, shape, bound: jax.random.uniform(
        kk, shape, jnp.float32, minval=-bound, maxval=bound)
    kfc = 1.0 / np.sqrt(2 * hidden_dim)
    return {
        # forward direction (weights stored transposed for x @ W layout)
        "wih_f": u(keys[0], (input_dim, 4 * hidden_dim), k),
        "whh_f": u(keys[1], (hidden_dim, 4 * hidden_dim), k),
        "b_f":   u(keys[2], (1, 4 * hidden_dim), k),      # b_ih + b_hh combined
        # reverse direction
        "wih_r": u(keys[3], (input_dim, 4 * hidden_dim), k),
        "whh_r": u(keys[4], (hidden_dim, 4 * hidden_dim), k),
        "b_r":   u(keys[5], (1, 4 * hidden_dim), k),
        # final fc: Linear(2H, output_dim)
        "wfc":   u(keys[6], (2 * hidden_dim, output_dim), kfc),
        "bfc":   u(keys[7], (1, output_dim), kfc),
    }


def reference_forward(x, p):
    """Pure-JAX reference of the same bi-LSTM + Linear (for correctness check)."""
    B, T, D = x.shape
    H = p["whh_f"].shape[0]

    def cell(carry, xt, wih, whh, b):
        h, c = carry
        g = xt @ wih + h @ whh + b
        i = jax.nn.sigmoid(g[:, :H])
        f = jax.nn.sigmoid(g[:, H:2 * H])
        gg = jnp.tanh(g[:, 2 * H:3 * H])
        o = jax.nn.sigmoid(g[:, 3 * H:])
        c = f * c + i * gg
        h = o * jnp.tanh(c)
        return (h, c), h

    h0 = jnp.zeros((B, H), jnp.float32)
    c0 = jnp.zeros((B, H), jnp.float32)
    x_t = jnp.transpose(x, (1, 0, 2))  # (T, B, D)

    _, hf = lax.scan(lambda c_, xt: cell(c_, xt, p["wih_f"], p["whh_f"], p["b_f"]),
                     (h0, c0), x_t)
    _, hr = lax.scan(lambda c_, xt: cell(c_, xt, p["wih_r"], p["whh_r"], p["b_r"]),
                     (h0, c0), x_t[::-1])
    hr = hr[::-1]
    hcat = jnp.concatenate([hf, hr], axis=-1)           # (T, B, 2H)
    y = hcat @ p["wfc"] + p["bfc"]                      # (T, B, D_out)
    return jnp.transpose(y, (1, 0, 2))


if __name__ == "__main__":
    # Small shapes consistent with the module: batch=2, seq=8, input_dim=16,
    # hidden_dim=32, output_dim=4.
    B, T, D_IN, H, D_OUT = 2, 8, 16, 32, 4

    key = jax.random.PRNGKey(0)
    kx, kp = jax.random.split(key)
    x = jax.random.normal(kx, (B, T, D_IN), jnp.float32)
    params = init_params(kp, D_IN, H, D_OUT)

    out = rna_pair_lstm_forward(x, params)
    out = jax.block_until_ready(out)

    ref = jax.block_until_ready(reference_forward(x, params))
    assert out.shape == (B, T, D_OUT), out.shape
    np.testing.assert_allclose(np.asarray(out), np.asarray(ref), atol=1e-4, rtol=1e-4)

    print("KERNEL_OK")
</pallas_src>

<mosaic_0001>
module attributes {stable_mosaic.version = 11 : i64} {
  func.func @_bilstm_fc_kernel(%arg0: memref<8x2x16xf32, #tpu.memory_space<vmem>>, %arg1: memref<16x256xf32, #tpu.memory_space<vmem>>, %arg2: memref<1x256xf32, #tpu.memory_space<vmem>>, %arg3: memref<64x256xf32, #tpu.memory_space<vmem>>, %arg4: memref<1x256xf32, #tpu.memory_space<vmem>>, %arg5: memref<32x4xf32, #tpu.memory_space<vmem>>, %arg6: memref<32x4xf32, #tpu.memory_space<vmem>>, %arg7: memref<1x4xf32, #tpu.memory_space<vmem>>, %arg8: memref<8x2x4xf32, #tpu.memory_space<vmem>>, %arg9: memref<8x2x256xf32, #tpu.memory_space<vmem>>, %arg10: memref<8x2x32xf32, #tpu.memory_space<vmem>>, %arg11: memref<8x2x32xf32, #tpu.memory_space<vmem>>) attributes {dimension_semantics = [], scalar_prefetch = 0 : i64, scratch_operands = 3 : i64, tpu.core_type = #tpu.core_type<tc>} {
    %c0 = arith.constant 0 : index
    %c0_0 = arith.constant 0 : index
    %c0_1 = arith.constant 0 : index
    %0 = vector.load %arg0[%c0, %c0_0, %c0_1] : memref<8x2x16xf32, #tpu.memory_space<vmem>>, vector<8x2x16xf32>
    %1 = vector.shape_cast %0 : vector<8x2x16xf32> to vector<16x16xf32>
    %c0_2 = arith.constant 0 : index
    %c0_3 = arith.constant 0 : index
    %2 = vector.load %arg1[%c0_2, %c0_3] : memref<16x256xf32, #tpu.memory_space<vmem>>, vector<16x256xf32>
    %cst = arith.constant dense<0.000000e+00> : vector<16x256xf32>
    %3 = tpu.matmul %1, %2, %cst {dimension_numbers = #tpu.dot_dimension_numbers<[1], [0], [0], [1], [0, 0, 1, 1], [], []>} : vector<16x16xf32>, vector<16x256xf32>, vector<16x256xf32> -> vector<16x256xf32>
    %c0_4 = arith.constant 0 : index
    %c0_5 = arith.constant 0 : index
    %4 = vector.load %arg2[%c0_4, %c0_5] : memref<1x256xf32, #tpu.memory_space<vmem>>, vector<1x256xf32>
    %5 = vector.broadcast %4 : vector<1x256xf32> to vector<16x256xf32>
    %6 = arith.addf %3, %5 : vector<16x256xf32>
    %7 = vector.shape_cast %6 : vector<16x256xf32> to vector<8x2x256xf32>
    %c0_6 = arith.constant 0 : index
    %c0_7 = arith.constant 0 : index
    %c0_8 = arith.constant 0 : index
    %8 = vector.load %arg9[%c0_6, %c0_7, %c0_8] : memref<8x2x256xf32, #tpu.memory_space<vmem>>, vector<8x2x256xf32>
    tpu.vector_store %arg9[%c0_6, %c0_7, %c0_8], %7 {strides = array<i32>} : memref<8x2x256xf32, #tpu.memory_space<vmem>>, vector<8x2x256xf32>,
    %c0_9 = arith.constant 0 : index
    %c0_10 = arith.constant 0 : index
    %9 = vector.load %arg3[%c0_9, %c0_10] : memref<64x256xf32, #tpu.memory_space<vmem>>, vector<64x256xf32>
    %c0_11 = arith.constant 0 : index
    %c0_12 = arith.constant 0 : index
    %10 = vector.load %arg4[%c0_11, %c0_12] : memref<1x256xf32, #tpu.memory_space<vmem>>, vector<1x256xf32>
    %cst_13 = arith.constant 0.000000e+00 : f32
    %11 = vector.broadcast %cst_13 : f32 to vector<2x64xf32>
    %cst_14 = arith.constant 0.000000e+00 : f32
    %12 = vector.broadcast %cst_14 : f32 to vector<2x64xf32>
    %c0_i32 = arith.constant 0 : i32
    %c7_i32 = arith.constant 7 : i32
    %13 = arith.subi %c7_i32, %c0_i32 : i32
    %14 = arith.index_cast %c0_i32 : i32 to index
    %c0_15 = arith.constant 0 : index
    %c0_16 = arith.constant 0 : index
    %15 = vector.load %arg9[%14, %c0_15, %c0_16] : memref<8x2x256xf32, #tpu.memory_space<vmem>>, vector<1x2x256xf32>
    %16 = vector.shape_cast %15 : vector<1x2x256xf32> to vector<2x256xf32>
    %17 = arith.index_cast %13 : i32 to index
    %c0_17 = arith.constant 0 : index
    %c0_18 = arith.constant 0 : index
    %18 = vector.load %arg9[%17, %c0_17, %c0_18] : memref<8x2x256xf32, #tpu.memory_space<vmem>>, vector<1x2x256xf32>
    %19 = vector.shape_cast %18 : vector<1x2x256xf32> to vector<2x256xf32>
    %20 = arith.subf %16, %19 : vector<2x256xf32>
    %21 = vector.broadcast %10 : vector<1x256xf32> to vector<2x256xf32>
    %22 = arith.mulf %21, %20 : vector<2x256xf32>
    %23 = arith.addf %19, %22 : vector<2x256xf32>
    %cst_19 = arith.constant dense<0.000000e+00> : vector<2x256xf32>
    %24 = tpu.matmul %11, %9, %cst_19 {dimension_numbers = #tpu.dot_dimension_numbers<[1], [0], [0], [1], [0, 0, 1, 1], [], []>} : vector<2x64xf32>, vector<64x256xf32>, vector<2x256xf32> -> vector<2x256xf32>
    %25 = arith.addf %23, %24 : vector<2x256xf32>
    %26 = vector.extract_strided_slice %25 {offsets = [0, 0], sizes = [2, 64], strides = [1, 1]} : vector<2x256xf32> to vector<2x64xf32>
    %27 = arith.negf %26 : vector<2x64xf32>
    %28 = math.exp %27 : vector<2x64xf32>
    %cst_20 = arith.constant 1.000000e+00 : f32
    %29 = vector.broadcast %cst_20 : f32 to vector<2x64xf32>
    %30 = arith.addf %29, %28 : vector<2x64xf32>
    %31 = arith.divf %29, %30 : vector<2x64xf32>
    %32 = vector.extract_strided_slice %25 {offsets = [0, 64], sizes = [2, 64], strides = [1, 1]} : vector<2x256xf32> to vector<2x64xf32>
    %33 = arith.negf %32 : vector<2x64xf32>
    %34 = math.exp %33 : vector<2x64xf32>
    %cst_21 = arith.constant 1.000000e+00 : f32
    %35 = vector.broadcast %cst_21 : f32 to vector<2x64xf32>
    %36 = arith.addf %35, %34 : vector<2x64xf32>
    %37 = arith.divf %35, %36 : vector<2x64xf32>
    %38 = vector.extract_strided_slice %25 {offsets = [0, 128], sizes = [2, 64], strides = [1, 1]} : vector<2x256xf32> to vector<2x64xf32>
    %39 = math.tanh %38 : vector<2x64xf32>
    %40 = vector.extract_strided_slice %25 {offsets = [0, 192], sizes = [2, 64], strides = [1, 1]} : vector<2x256xf32> to vector<2x64xf32>
    %41 = arith.negf %40 : vector<2x64xf32>
    %42 = math.exp %41 : vector<2x64xf32>
    %cst_22 = arith.constant 1.000000e+00 : f32
    %43 = vector.broadcast %cst_22 : f32 to vector<2x64xf32>
    %44 = arith.addf %43, %42 : vector<2x64xf32>
    %45 = arith.divf %43, %44 : vector<2x64xf32>
    %46 = arith.mulf %37, %12 : vector<2x64xf32>
    %47 = arith.mulf %31, %39 : vector<2x64xf32>
    %48 = arith.addf %46, %47 : vector<2x64xf32>
    %49 = math.tanh %48 : vector<2x64xf32>
    %50 = arith.mulf %45, %49 : vector<2x64xf32>
    %51 = vector.extract_strided_slice %50 {offsets = [0, 0], sizes = [2, 32], strides = [1, 1]} : vector<2x64xf32> to vector<2x32xf32>
    %52 = arith.index_cast %c0_i32 : i32 to index
    %c0_23 = arith.constant 0 : index
    %c0_24 = arith.constant 0 : index
    %53 = vector.load %arg10[%52, %c0_23, %c0_24] : memref<8x2x32xf32, #tpu.memory_space<vmem>>, vector<1x2x32xf32>
    %54 = vector.shape_cast %53 : vector<1x2x32xf32> to vector<2x32xf32>
    %55 = vector.shape_cast %51 : vector<2x32xf32> to vector<1x2x32xf32>
    tpu.vector_store %arg10[%52, %c0_23, %c0_24], %55 {strides = array<i32>} : memref<8x2x32xf32, #tpu.memory_space<vmem>>, vector<1x2x32xf32>,
    %56 = vector.extract_strided_slice %50 {offsets = [0, 32], sizes = [2, 32], strides = [1, 1]} : vector<2x64xf32> to vector<2x32xf32>
    %57 = arith.index_cast %13 : i32 to index
    %c0_25 = arith.constant 0 : index
    %c0_26 = arith.constant 0 : index
    %58 = vector.load %arg11[%57, %c0_25, %c0_26] : memref<8x2x32xf32, #tpu.memory_space<vmem>>, vector<1x2x32xf32>
    %59 = vector.shape_cast %58 : vector<1x2x32xf32> to vector<2x32xf32>
    %60 = vector.shape_cast %56 : vector<2x32xf32> to vector<1x2x32xf32>
    tpu.vector_store %arg11[%57, %c0_25, %c0_26], %60 {strides = array<i32>} : memref<8x2x32xf32, #tpu.memory_space<vmem>>, vector<1x2x32xf32>,
    %c1_i32 = arith.constant 1 : i32
    %c7_i32_27 = arith.constant 7 : i32
    %61 = arith.subi %c7_i32_27, %c1_i32 : i32
    %62 = arith.index_cast %c1_i32 : i32 to index
    %c0_28 = arith.constant 0 : index
    %c0_29 = arith.constant 0 : index
    %63 = vector.load %arg9[%62, %c0_28, %c0_29] : memref<8x2x256xf32, #tpu.memory_space<vmem>>, vector<1x2x256xf32>
    %64 = vector.shape_cast %63 : vector<1x2x256xf32> to vector<2x256xf32>
    %65 = arith.index_cast %61 : i32 to index
    %c0_30 = arith.constant 0 : index
    %c0_31 = arith.constant 0 : index
    %66 = vector.load %arg9[%65, %c0_30, %c0_31] : memref<8x2x256xf32, #tpu.memory_space<vmem>>, vector<1x2x256xf32>
    %67 = vector.shape_cast %66 : vector<1x2x256xf32> to vector<2x256xf32>
    %68 = arith.subf %64, %67 : vector<2x256xf32>
    %69 = vector.broadcast %10 : vector<1x256xf32> to vector<2x256xf32>
    %70 = arith.mulf %69, %68 : vector<2x256xf32>
    %71 = arith.addf %67, %70 : vector<2x256xf32>
    %cst_32 = arith.constant dense<0.000000e+00> : vector<2x256xf32>
    %72 = tpu.matmul %50, %9, %cst_32 {dimension_numbers = #tpu.dot_dimension_numbers<[1], [0], [0], [1], [0, 0, 1, 1], [], []>} : vector<2x64xf32>, vector<64x256xf32>, vector<2x256xf32> -> vector<2x256xf32>
    %73 = arith.addf %71, %72 : vector<2x256xf32>
    %74 = vector.extract_strided_slice %73 {offsets = [0, 0], sizes = [2, 64], strides = [1, 1]} : vector<2x256xf32> to vector<2x64xf32>
    %75 = arith.negf %74 : vector<2x64xf32>
    %76 = math.exp %75 : vector<2x64xf32>
    %cst_33 = arith.constant 1.000000e+00 : f32
    %77 = vector.broadcast %cst_33 : f32 to vector<2x64xf32>
    %78 = arith.addf %77, %76 : vector<2x64xf32>
    %79 = arith.divf %77, %78 : vector<2x64xf32>
    %80 = vector.extract_strided_slice %73 {offsets = [0, 64], sizes = [2, 64], strides = [1, 1]} : vector<2x256xf32> to vector<2x64xf32>
    %81 = arith.negf %80 : vector<2x64xf32>
    %82 = math.exp %81 : vector<2x64xf32>
    %cst_34 = arith.constant 1.000000e+00 : f32
    %83 = vector.broadcast %cst_34 : f32 to vector<2x64xf32>
    %84 = arith.addf %83, %82 : vector<2x64xf32>
    %85 = arith.divf %83, %84 : vector<2x64xf32>
    %86 = vector.extract_strided_slice %73 {offsets = [0, 128], sizes = [2, 64], strides = [1, 1]} : vector<2x256xf32> to vector<2x64xf32>
    %87 = math.tanh %86 : vector<2x64xf32>
    %88 = vector.extract_strided_slice %73 {offsets = [0, 192], sizes = [2, 64], strides = [1, 1]} : vector<2x256xf32> to vector<2x64xf32>
    %89 = arith.negf %88 : vector<2x64xf32>
    %90 = math.exp %89 : vector<2x64xf32>
    %cst_35 = arith.constant 1.000000e+00 : f32
    %91 = vector.broadcast %cst_35 : f32 to vector<2x64xf32>
    %92 = arith.addf %91, %90 : vector<2x64xf32>
    %93 = arith.divf %91, %92 : vector<2x64xf32>
    %94 = arith.mulf %85, %48 : vector<2x64xf32>
    %95 = arith.mulf %79, %87 : vector<2x64xf32>
    %96 = arith.addf %94, %95 : vector<2x64xf32>
    %97 = math.tanh %96 : vector<2x64xf32>
    %98 = arith.mulf %93, %97 : vector<2x64xf32>
    %99 = vector.extract_strided_slice %98 {offsets = [0, 0], sizes = [2, 32], strides = [1, 1]} : vector<2x64xf32> to vector<2x32xf32>
    %100 = arith.index_cast %c1_i32 : i32 to index
    %c0_36 = arith.constant 0 : index
    %c0_37 = arith.constant 0 : index
    %101 = vector.load %arg10[%100, %c0_36, %c0_37] : memref<8x2x32xf32, #tpu.memory_space<vmem>>, vector<1x2x32xf32>
    %102 = vector.shape_cast %101 : vector<1x2x32xf32> to vector<2x32xf32>
    %103 = vector.shape_cast %99 : vector<2x32xf32> to vector<1x2x32xf32>
    tpu.vector_store %arg10[%100, %c0_36, %c0_37], %103 {strides = array<i32>} : memref<8x2x32xf32, #tpu.memory_space<vmem>>, vector<1x2x32xf32>,
    %104 = vector.extract_strided_slice %98 {offsets = [0, 32], sizes = [2, 32], strides = [1, 1]} : vector<2x64xf32> to vector<2x32xf32>
    %105 = arith.index_cast %61 : i32 to index
    %c0_38 = arith.constant 0 : index
    %c0_39 = arith.constant 0 : index
    %106 = vector.load %arg11[%105, %c0_38, %c0_39] : memref<8x2x32xf32, #tpu.memory_space<vmem>>, vector<1x2x32xf32>
    %107 = vector.shape_cast %106 : vector<1x2x32xf32> to vector<2x32xf32>
    %108 = vector.shape_cast %104 : vector<2x32xf32> to vector<1x2x32xf32>
    tpu.vector_store %arg11[%105, %c0_38, %c0_39], %108 {strides = array<i32>} : memref<8x2x32xf32, #tpu.memory_space<vmem>>, vector<1x2x32xf32>,
    %c2_i32 = arith.constant 2 : i32
    %c7_i32_40 = arith.constant 7 : i32
    %109 = arith.subi %c7_i32_40, %c2_i32 : i32
    %110 = arith.index_cast %c2_i32 : i32 to index
    %c0_41 = arith.constant 0 : index
    %c0_42 = arith.constant 0 : index
    %111 = vector.load %arg9[%110, %c0_41, %c0_42] : memref<8x2x256xf32, #tpu.memory_space<vmem>>, vector<1x2x256xf32>
    %112 = vector.shape_cast %111 : vector<1x2x256xf32> to vector<2x256xf32>
    %113 = arith.index_cast %109 : i32 to index
    %c0_43 = arith.constant 0 : index
    %c0_44 = arith.constant 0 : index
    %114 = vector.load %arg9[%113, %c0_43, %c0_44] : memref<8x2x256xf32, #tpu.memory_space<vmem>>, vector<1x2x256xf32>
    %115 = vector.shape_cast %114 : vector<1x2x256xf32> to vector<2x256xf32>
    %116 = arith.subf %112, %115 : vector<2x256xf32>
    %117 = vector.broadcast %10 : vector<1x256xf32> to vector<2x256xf32>
    %118 = arith.mulf %117, %116 : vector<2x256xf32>
    %119 = arith.addf %115, %118 : vector<2x256xf32>
    %cst_45 = arith.constant dense<0.000000e+00> : vector<2x256xf32>
    %120 = tpu.matmul %98, %9, %cst_45 {dimension_numbers = #tpu.dot_dimension_numbers<[1], [0], [0], [1], [0, 0, 1, 1], [], []>} : vector<2x64xf32>, vector<64x256xf32>, vector<2x256xf32> -> vector<2x256xf32>
    %121 = arith.addf %119, %120 : vector<2x256xf32>
    %122 = vector.extract_strided_slice %121 {offsets = [0, 0], sizes = [2, 64], strides = [1, 1]} : vector<2x256xf32> to vector<2x64xf32>
    %123 = arith.negf %122 : vector<2x64xf32>
    %124 = math.exp %123 : vector<2x64xf32>
    %cst_46 = arith.constant 1.000000e+00 : f32
    %125 = vector.broadcast %cst_46 : f32 to vector<2x64xf32>
    %126 = arith.addf %125, %124 : vector<2x64xf32>
    %127 = arith.divf %125, %126 : vector<2x64xf32>
    %128 = vector.extract_strided_slice %121 {offsets = [0, 64], sizes = [2, 64], strides = [1, 1]} : vector<2x256xf32> to vector<2x64xf32>
    %129 = arith.negf %128 : vector<2x64xf32>
    %130 = math.exp %129 : vector<2x64xf32>
    %cst_47 = arith.constant 1.000000e+00 : f32
    %131 = vector.broadcast %cst_47 : f32 to vector<2x64xf32>
    %132 = arith.addf %131, %130 : vector<2x64xf32>
    %133 = arith.divf %131, %132 : vector<2x64xf32>
    %134 = vector.extract_strided_slice %121 {offsets = [0, 128], sizes = [2, 64], strides = [1, 1]} : vector<2x256xf32> to vector<2x64xf32>
    %135 = math.tanh %134 : vector<2x64xf32>
    %136 = vector.extract_strided_slice %121 {offsets = [0, 192], sizes = [2, 64], strides = [1, 1]} : vector<2x256xf32> to vector<2x64xf32>
    %137 = arith.negf %136 : vector<2x64xf32>
    %138 = math.exp %137 : vector<2x64xf32>
    %cst_48 = arith.constant 1.000000e+00 : f32
    %139 = vector.broadcast %cst_48 : f32 to vector<2x64xf32>
    %140 = arith.addf %139, %138 : vector<2x64xf32>
    %141 = arith.divf %139, %140 : vector<2x64xf32>
    %142 = arith.mulf %133, %96 : vector<2x64xf32>
    %143 = arith.mulf %127, %135 : vector<2x64xf32>
    %144 = arith.addf %142, %143 : vector<2x64xf32>
    %145 = math.tanh %144 : vector<2x64xf32>
    %146 = arith.mulf %141, %145 : vector<2x64xf32>
    %147 = vector.extract_strided_slice %146 {offsets = [0, 0], sizes = [2, 32], strides = [1, 1]} : vector<2x64xf32> to vector<2x32xf32>
    %148 = arith.index_cast %c2_i32 : i32 to index
    %c0_49 = arith.constant 0 : index
    %c0_50 = arith.constant 0 : index
    %149 = vector.load %arg10[%148, %c0_49, %c0_50] : memref<8x2x32xf32, #tpu.memory_space<vmem>>, vector<1x2x32xf32>
    %150 = vector.shape_cast %149 : vector<1x2x32xf32> to vector<2x32xf32>
    %151 = vector.shape_cast %147 : vector<2x32xf32> to vector<1x2x32xf32>
    tpu.vector_store %arg10[%148, %c0_49, %c0_50], %151 {strides = array<i32>} : memref<8x2x32xf32, #tpu.memory_space<vmem>>, vector<1x2x32xf32>,
    %152 = vector.extract_strided_slice %146 {offsets = [0, 32], sizes = [2, 32], strides = [1, 1]} : vector<2x64xf32> to vector<2x32xf32>
    %153 = arith.index_cast %109 : i32 to index
    %c0_51 = arith.constant 0 : index
    %c0_52 = arith.constant 0 : index
    %154 = vector.load %arg11[%153, %c0_51, %c0_52] : memref<8x2x32xf32, #tpu.memory_space<vmem>>, vector<1x2x32xf32>
    %155 = vector.shape_cast %154 : vector<1x2x32xf32> to vector<2x32xf32>
    %156 = vector.shape_cast %152 : vector<2x32xf32> to vector<1x2x32xf32>
    tpu.vector_store %arg11[%153, %c0_51, %c0_52], %156 {strides = array<i32>} : memref<8x2x32xf32, #tpu.memory_space<vmem>>, vector<1x2x32xf32>,
    %c3_i32 = arith.constant 3 : i32
    %c7_i32_53 = arith.constant 7 : i32
    %157 = arith.subi %c7_i32_53, %c3_i32 : i32
    %158 = arith.index_cast %c3_i32 : i32 to index
    %c0_54 = arith.constant 0 : index
    %c0_55 = arith.constant 0 : index
    %159 = vector.load %arg9[%158, %c0_54, %c0_55] : memref<8x2x256xf32, #tpu.memory_space<vmem>>, vector<1x2x256xf32>
    %160 = vector.shape_cast %159 : vector<1x2x256xf32> to vector<2x256xf32>
    %161 = arith.index_cast %157 : i32 to index
    %c0_56 = arith.constant 0 : index
    %c0_57 = arith.constant 0 : index
    %162 = vector.load %arg9[%161, %c0_56, %c0_57] : memref<8x2x256xf32, #tpu.memory_space<vmem>>, vector<1x2x256xf32>
    %163 = vector.shape_cast %162 : vector<1x2x256xf32> to vector<2x256xf32>
    %164 = arith.subf %160, %163 : vector<2x256xf32>
    %165 = vector.broadcast %10 : vector<1x256xf32> to vector<2x256xf32>
    %166 = arith.mulf %165, %164 : vector<2x256xf32>
    %167 = arith.addf %163, %166 : vector<2x256xf32>
    %cst_58 = arith.constant dense<0.000000e+00> : vector<2x256xf32>
    %168 = tpu.matmul %146, %9, %cst_58 {dimension_numbers = #tpu.dot_dimension_numbers<[1], [0], [0], [1], [0, 0, 1, 1], [], []>} : vector<2x64xf32>, vector<64x256xf32>, vector<2x256xf32> -> vector<2x256xf32>
    %169 = arith.addf %167, %168 : vector<2x256xf32>
    %170 = vector.extract_strided_slice %169 {offsets = [0, 0], sizes = [2, 64], strides = [1, 1]} : vector<2x256xf32> to vector<2x64xf32>
    %171 = arith.negf %170 : vector<2x64xf32>
    %172 = math.exp %171 : vector<2x64xf32>
    %cst_59 = arith.constant 1.000000e+00 : f32
    %173 = vector.broadcast %cst_59 : f32 to vector<2x64xf32>
    %174 = arith.addf %173, %172 : vector<2x64xf32>
    %175 = arith.divf %173, %174 : vector<2x64xf32>
    %176 = vector.extract_strided_slice %169 {offsets = [0, 64], sizes = [2, 64], strides = [1, 1]} : vector<2x256xf32> to vector<2x64xf32>
    %177 = arith.negf %176 : vector<2x64xf32>
    %178 = math.exp %177 : vector<2x64xf32>
    %cst_60 = arith.constant 1.000000e+00 : f32
    %179 = vector.broadcast %cst_60 : f32 to vector<2x64xf32>
    %180 = arith.addf %179, %178 : vector<2x64xf32>
    %181 = arith.divf %179, %180 : vector<2x64xf32>
    %182 = vector.extract_strided_slice %169 {offsets = [0, 128], sizes = [2, 64], strides = [1, 1]} : vector<2x256xf32> to vector<2x64xf32>
    %183 = math.tanh %182 : vector<2x64xf32>
    %184 = vector.extract_strided_slice %169 {offsets = [0, 192], sizes = [2, 64], strides = [1, 1]} : vector<2x256xf32> to vector<2x64xf32>
    %185 = arith.negf %184 : vector<2x64xf32>
    %186 = math.exp %185 : vector<2x64xf32>
    %cst_61 = arith.constant 1.000000e+00 : f32
    %187 = vector.broadcast %cst_61 : f32 to vector<2x64xf32>
    %188 = arith.addf %187, %186 : vector<2x64xf32>
    %189 = arith.divf %187, %188 : vector<2x64xf32>
    %190 = arith.mulf %181, %144 : vector<2x64xf32>
    %191 = arith.mulf %175, %183 : vector<2x64xf32>
    %192 = arith.addf %190, %191 : vector<2x64xf32>
    %193 = math.tanh %192 : vector<2x64xf32>
    %194 = arith.mulf %189, %193 : vector<2x64xf32>
    %195 = vector.extract_strided_slice %194 {offsets = [0, 0], sizes = [2, 32], strides = [1, 1]} : vector<2x64xf32> to vector<2x32xf32>
    %196 = arith.index_cast %c3_i32 : i32 to index
    %c0_62 = arith.constant 0 : index
    %c0_63 = arith.constant 0 : index
    %197 = vector.load %arg10[%196, %c0_62, %c0_63] : memref<8x2x32xf32, #tpu.memory_space<vmem>>, vector<1x2x32xf32>
    %198 = vector.shape_cast %197 : vector<1x2x32xf32> to vector<2x32xf32>
    %199 = vector.shape_cast %195 : vector<2x32xf32> to vector<1x2x32xf32>
    tpu.vector_store %arg10[%196, %c0_62, %c0_63], %199 {strides = array<i32>} : memref<8x2x32xf32, #tpu.memory_space<vmem>>, vector<1x2x32xf32>,
    %200 = vector.extract_strided_slice %194 {offsets = [0, 32], sizes = [2, 32], strides = [1, 1]} : vector<2x64xf32> to vector<2x32xf32>
    %201 = arith.index_cast %157 : i32 to index
    %c0_64 = arith.constant 0 : index
    %c0_65 = arith.constant 0 : index
    %202 = vector.load %arg11[%201, %c0_64, %c0_65] : memref<8x2x32xf32, #tpu.memory_space<vmem>>, vector<1x2x32xf32>
    %203 = vector.shape_cast %202 : vector<1x2x32xf32> to vector<2x32xf32>
    %204 = vector.shape_cast %200 : vector<2x32xf32> to vector<1x2x32xf32>
    tpu.vector_store %arg11[%201, %c0_64, %c0_65], %204 {strides = array<i32>} : memref<8x2x32xf32, #tpu.memory_space<vmem>>, vector<1x2x32xf32>,
    %c4_i32 = arith.constant 4 : i32
    %c7_i32_66 = arith.constant 7 : i32
    %205 = arith.subi %c7_i32_66, %c4_i32 : i32
    %206 = arith.index_cast %c4_i32 : i32 to index
    %c0_67 = arith.constant 0 : index
    %c0_68 = arith.constant 0 : index
    %207 = vector.load %arg9[%206, %c0_67, %c0_68] : memref<8x2x256xf32, #tpu.memory_space<vmem>>, vector<1x2x256xf32>
    %208 = vector.shape_cast %207 : vector<1x2x256xf32> to vector<2x256xf32>
    %209 = arith.index_cast %205 : i32 to index
    %c0_69 = arith.constant 0 : index
    %c0_70 = arith.constant 0 : index
    %210 = vector.load %arg9[%209, %c0_69, %c0_70] : memref<8x2x256xf32, #tpu.memory_space<vmem>>, vector<1x2x256xf32>
    %211 = vector.shape_cast %210 : vector<1x2x256xf32> to vector<2x256xf32>
    %212 = arith.subf %208, %211 : vector<2x256xf32>
    %213 = vector.broadcast %10 : vector<1x256xf32> to vector<2x256xf32>
    %214 = arith.mulf %213, %212 : vector<2x256xf32>
    %215 = arith.addf %211, %214 : vector<2x256xf32>
    %cst_71 = arith.constant dense<0.000000e+00> : vector<2x256xf32>
    %216 = tpu.matmul %194, %9, %cst_71 {dimension_numbers = #tpu.dot_dimension_numbers<[1], [0], [0], [1], [0, 0, 1, 1], [], []>} : vector<2x64xf32>, vector<64x256xf32>, vector<2x256xf32> -> vector<2x256xf32>
    %217 = arith.addf %215, %216 : vector<2x256xf32>
    %218 = vector.extract_strided_slice %217 {offsets = [0, 0], sizes = [2, 64], strides = [1, 1]} : vector<2x256xf32> to vector<2x64xf32>
    %219 = arith.negf %218 : vector<2x64xf32>
    %220 = math.exp %219 : vector<2x64xf32>
    %cst_72 = arith.constant 1.000000e+00 : f32
    %221 = vector.broadcast %cst_72 : f32 to vector<2x64xf32>
    %222 = arith.addf %221, %220 : vector<2x64xf32>
    %223 = arith.divf %221, %222 : vector<2x64xf32>
    %224 = vector.extract_strided_slice %217 {offsets = [0, 64], sizes = [2, 64], strides = [1, 1]} : vector<2x256xf32> to vector<2x64xf32>
    %225 = arith.negf %224 : vector<2x64xf32>
    %226 = math.exp %225 : vector<2x64xf32>
    %cst_73 = arith.constant 1.000000e+00 : f32
    %227 = vector.broadcast %cst_73 : f32 to vector<2x64xf32>
    %228 = arith.addf %227, %226 : vector<2x64xf32>
    %229 = arith.divf %227, %228 : vector<2x64xf32>
    %230 = vector.extract_strided_slice %217 {offsets = [0, 128], sizes = [2, 64], strides = [1, 1]} : vector<2x256xf32> to vector<2x64xf32>
    %231 = math.tanh %230 : vector<2x64xf32>
    %232 = vector.extract_strided_slice %217 {offsets = [0, 192], sizes = [2, 64], strides = [1, 1]} : vector<2x256xf32> to vector<2x64xf32>
    %233 = arith.negf %232 : vector<2x64xf32>
    %234 = math.exp %233 : vector<2x64xf32>
    %cst_74 = arith.constant 1.000000e+00 : f32
    %235 = vector.broadcast %cst_74 : f32 to vector<2x64xf32>
    %236 = arith.addf %235, %234 : vector<2x64xf32>
    %237 = arith.divf %235, %236 : vector<2x64xf32>
    %238 = arith.mulf %229, %192 : vector<2x64xf32>
    %239 = arith.mulf %223, %231 : vector<2x64xf32>
    %240 = arith.addf %238, %239 : vector<2x64xf32>
    %241 = math.tanh %240 : vector<2x64xf32>
    %242 = arith.mulf %237, %241 : vector<2x64xf32>
    %243 = vector.extract_strided_slice %242 {offsets = [0, 0], sizes = [2, 32], strides = [1, 1]} : vector<2x64xf32> to vector<2x32xf32>
    %244 = arith.index_cast %c4_i32 : i32 to index
    %c0_75 = arith.constant 0 : index
    %c0_76 = arith.constant 0 : index
    %245 = vector.load %arg10[%244, %c0_75, %c0_76] : memref<8x2x32xf32, #tpu.memory_space<vmem>>, vector<1x2x32xf32>
    %246 = vector.shape_cast %245 : vector<1x2x32xf32> to vector<2x32xf32>
    %247 = vector.shape_cast %243 : vector<2x32xf32> to vector<1x2x32xf32>
    tpu.vector_store %arg10[%244, %c0_75, %c0_76], %247 {strides = array<i32>} : memref<8x2x32xf32, #tpu.memory_space<vmem>>, vector<1x2x32xf32>,
    %248 = vector.extract_strided_slice %242 {offsets = [0, 32], sizes = [2, 32], strides = [1, 1]} : vector<2x64xf32> to vector<2x32xf32>
    %249 = arith.index_cast %205 : i32 to index
    %c0_77 = arith.constant 0 : index
    %c0_78 = arith.constant 0 : index
    %250 = vector.load %arg11[%249, %c0_77, %c0_78] : memref<8x2x32xf32, #tpu.memory_space<vmem>>, vector<1x2x32xf32>
    %251 = vector.shape_cast %250 : vector<1x2x32xf32> to vector<2x32xf32>
    %252 = vector.shape_cast %248 : vector<2x32xf32> to vector<1x2x32xf32>
    tpu.vector_store %arg11[%249, %c0_77, %c0_78], %252 {strides = array<i32>} : memref<8x2x32xf32, #tpu.memory_space<vmem>>, vector<1x2x32xf32>,
    %c5_i32 = arith.constant 5 : i32
    %c7_i32_79 = arith.constant 7 : i32
    %253 = arith.subi %c7_i32_79, %c5_i32 : i32
    %254 = arith.index_cast %c5_i32 : i32 to index
    %c0_80 = arith.constant 0 : index
    %c0_81 = arith.constant 0 : index
    %255 = vector.load %arg9[%254, %c0_80, %c0_81] : memref<8x2x256xf32, #tpu.memory_space<vmem>>, vector<1x2x256xf32>
    %256 = vector.shape_cast %255 : vector<1x2x256xf32> to vector<2x256xf32>
    %257 = arith.index_cast %253 : i32 to index
    %c0_82 = arith.constant 0 : index
    %c0_83 = arith.constant 0 : index
    %258 = vector.load %arg9[%257, %c0_82, %c0_83] : memref<8x2x256xf32, #tpu.memory_space<vmem>>, vector<1x2x256xf32>
    %259 = vector.shape_cast %258 : vector<1x2x256xf32> to vector<2x256xf32>
    %260 = arith.subf %256, %259 : vector<2x256xf32>
    %261 = vector.broadcast %10 : vector<1x256xf32> to vector<2x256xf32>
    %262 = arith.mulf %261, %260 : vector<2x256xf32>
    %263 = arith.addf %259, %262 : vector<2x256xf32>
    %cst_84 = arith.constant dense<0.000000e+00> : vector<2x256xf32>
    %264 = tpu.matmul %242, %9, %cst_84 {dimension_numbers = #tpu.dot_dimension_numbers<[1], [0], [0], [1], [0, 0, 1, 1], [], []>} : vector<2x64xf32>, vector<64x256xf32>, vector<2x256xf32> -> vector<2x256xf32>
    %265 = arith.addf %263, %264 : vector<2x256xf32>
    %266 = vector.extract_strided_slice %265 {offsets = [0, 0], sizes = [2, 64], strides = [1, 1]} : vector<2x256xf32> to vector<2x64xf32>
    %267 = arith.negf %266 : vector<2x64xf32>
    %268 = math.exp %267 : vector<2x64xf32>
    %cst_85 = arith.constant 1.000000e+00 : f32
    %269 = vector.broadcast %cst_85 : f32 to vector<2x64xf32>
    %270 = arith.addf %269, %268 : vector<2x64xf32>
    %271 = arith.divf %269, %270 : vector<2x64xf32>
    %272 = vector.extract_strided_slice %265 {offsets = [0, 64], sizes = [2, 64], strides = [1, 1]} : vector<2x256xf32> to vector<2x64xf32>
    %273 = arith.negf %272 : vector<2x64xf32>
    %274 = math.exp %273 : vector<2x64xf32>
    %cst_86 = arith.constant 1.000000e+00 : f32
    %275 = vector.broadcast %cst_86 : f32 to vector<2x64xf32>
    %276 = arith.addf %275, %274 : vector<2x64xf32>
    %277 = arith.divf %275, %276 : vector<2x64xf32>
    %278 = vector.extract_strided_slice %265 {offsets = [0, 128], sizes = [2, 64], strides = [1, 1]} : vector<2x256xf32> to vector<2x64xf32>
    %279 = math.tanh %278 : vector<2x64xf32>
    %280 = vector.extract_strided_slice %265 {offsets = [0, 192], sizes = [2, 64], strides = [1, 1]} : vector<2x256xf32> to vector<2x64xf32>
    %281 = arith.negf %280 : vector<2x64xf32>
    %282 = math.exp %281 : vector<2x64xf32>
    %cst_87 = arith.constant 1.000000e+00 : f32
    %283 = vector.broadcast %cst_87 : f32 to vector<2x64xf32>
    %284 = arith.addf %283, %282 : vector<2x64xf32>
    %285 = arith.divf %283, %284 : vector<2x64xf32>
    %286 = arith.mulf %277, %240 : vector<2x64xf32>
    %287 = arith.mulf %271, %279 : vector<2x64xf32>
    %288 = arith.addf %286, %287 : vector<2x64xf32>
    %289 = math.tanh %288 : vector<2x64xf32>
    %290 = arith.mulf %285, %289 : vector<2x64xf32>
    %291 = vector.extract_strided_slice %290 {offsets = [0, 0], sizes = [2, 32], strides = [1, 1]} : vector<2x64xf32> to vector<2x32xf32>
    %292 = arith.index_cast %c5_i32 : i32 to index
    %c0_88 = arith.constant 0 : index
    %c0_89 = arith.constant 0 : index
    %293 = vector.load %arg10[%292, %c0_88, %c0_89] : memref<8x2x32xf32, #tpu.memory_space<vmem>>, vector<1x2x32xf32>
    %294 = vector.shape_cast %293 : vector<1x2x32xf32> to vector<2x32xf32>
    %295 = vector.shape_cast %291 : vector<2x32xf32> to vector<1x2x32xf32>
    tpu.vector_store %arg10[%292, %c0_88, %c0_89], %295 {strides = array<i32>} : memref<8x2x32xf32, #tpu.memory_space<vmem>>, vector<1x2x32xf32>,
    %296 = vector.extract_strided_slice %290 {offsets = [0, 32], sizes = [2, 32], strides = [1, 1]} : vector<2x64xf32> to vector<2x32xf32>
    %297 = arith.index_cast %253 : i32 to index
    %c0_90 = arith.constant 0 : index
    %c0_91 = arith.constant 0 : index
    %298 = vector.load %arg11[%297, %c0_90, %c0_91] : memref<8x2x32xf32, #tpu.memory_space<vmem>>, vector<1x2x32xf32>
    %299 = vector.shape_cast %298 : vector<1x2x32xf32> to vector<2x32xf32>
    %300 = vector.shape_cast %296 : vector<2x32xf32> to vector<1x2x32xf32>
    tpu.vector_store %arg11[%297, %c0_90, %c0_91], %300 {strides = array<i32>} : memref<8x2x32xf32, #tpu.memory_space<vmem>>, vector<1x2x32xf32>,
    %c6_i32 = arith.constant 6 : i32
    %c7_i32_92 = arith.constant 7 : i32
    %301 = arith.subi %c7_i32_92, %c6_i32 : i32
    %302 = arith.index_cast %c6_i32 : i32 to index
    %c0_93 = arith.constant 0 : index
    %c0_94 = arith.constant 0 : index
    %303 = vector.load %arg9[%302, %c0_93, %c0_94] : memref<8x2x256xf32, #tpu.memory_space<vmem>>, vector<1x2x256xf32>
    %304 = vector.shape_cast %303 : vector<1x2x256xf32> to vector<2x256xf32>
    %305 = arith.index_cast %301 : i32 to index
    %c0_95 = arith.constant 0 : index
    %c0_96 = arith.constant 0 : index
    %306 = vector.load %arg9[%305, %c0_95, %c0_96] : memref<8x2x256xf32, #tpu.memory_space<vmem>>, vector<1x2x256xf32>
    %307 = vector.shape_cast %306 : vector<1x2x256xf32> to vector<2x256xf32>
    %308 = arith.subf %304, %307 : vector<2x256xf32>
    %309 = vector.broadcast %10 : vector<1x256xf32> to vector<2x256xf32>
    %310 = arith.mulf %309, %308 : vector<2x256xf32>
    %311 = arith.addf %307, %310 : vector<2x256xf32>
    %cst_97 = arith.constant dense<0.000000e+00> : vector<2x256xf32>
    %312 = tpu.matmul %290, %9, %cst_97 {dimension_numbers = #tpu.dot_dimension_numbers<[1], [0], [0], [1], [0, 0, 1, 1], [], []>} : vector<2x64xf32>, vector<64x256xf32>, vector<2x256xf32> -> vector<2x256xf32>
    %313 = arith.addf %311, %312 : vector<2x256xf32>
    %314 = vector.extract_strided_slice %313 {offsets = [0, 0], sizes = [2, 64], strides = [1, 1]} : vector<2x256xf32> to vector<2x64xf32>
    %315 = arith.negf %314 : vector<2x64xf32>
    %316 = math.exp %315 : vector<2x64xf32>
    %cst_98 = arith.constant 1.000000e+00 : f32
    %317 = vector.broadcast %cst_98 : f32 to vector<2x64xf32>
    %318 = arith.addf %317, %316 : vector<2x64xf32>
    %319 = arith.divf %317, %318 : vector<2x64xf32>
    %320 = vector.extract_strided_slice %313 {offsets = [0, 64], sizes = [2, 64], strides = [1, 1]} : vector<2x256xf32> to vector<2x64xf32>
    %321 = arith.negf %320 : vector<2x64xf32>
    %322 = math.exp %321 : vector<2x64xf32>
    %cst_99 = arith.constant 1.000000e+00 : f32
    %323 = vector.broadcast %cst_99 : f32 to vector<2x64xf32>
    %324 = arith.addf %323, %322 : vector<2x64xf32>
    %325 = arith.divf %323, %324 : vector<2x64xf32>
    %326 = vector.extract_strided_slice %313 {offsets = [0, 128], sizes = [2, 64], strides = [1, 1]} : vector<2x256xf32> to vector<2x64xf32>
    %327 = math.tanh %326 : vector<2x64xf32>
    %328 = vector.extract_strided_slice %313 {offsets = [0, 192], sizes = [2, 64], strides = [1, 1]} : vector<2x256xf32> to vector<2x64xf32>
    %329 = arith.negf %328 : vector<2x64xf32>
    %330 = math.exp %329 : vector<2x64xf32>
    %cst_100 = arith.constant 1.000000e+00 : f32
    %331 = vector.broadcast %cst_100 : f32 to vector<2x64xf32>
    %332 = arith.addf %331, %330 : vector<2x64xf32>
    %333 = arith.divf %331, %332 : vector<2x64xf32>
    %334 = arith.mulf %325, %288 : vector<2x64xf32>
    %335 = arith.mulf %319, %327 : vector<2x64xf32>
    %336 = arith.addf %334, %335 : vector<2x64xf32>
    %337 = math.tanh %336 : vector<2x64xf32>
    %338 = arith.mulf %333, %337 : vector<2x64xf32>
    %339 = vector.extract_strided_slice %338 {offsets = [0, 0], sizes = [2, 32], strides = [1, 1]} : vector<2x64xf32> to vector<2x32xf32>
    %340 = arith.index_cast %c6_i32 : i32 to index
    %c0_101 = arith.constant 0 : index
    %c0_102 = arith.constant 0 : index
    %341 = vector.load %arg10[%340, %c0_101, %c0_102] : memref<8x2x32xf32, #tpu.memory_space<vmem>>, vector<1x2x32xf32>
    %342 = vector.shape_cast %341 : vector<1x2x32xf32> to vector<2x32xf32>
    %343 = vector.shape_cast %339 : vector<2x32xf32> to vector<1x2x32xf32>
    tpu.vector_store %arg10[%340, %c0_101, %c0_102], %343 {strides = array<i32>} : memref<8x2x32xf32, #tpu.memory_space<vmem>>, vector<1x2x32xf32>,
    %344 = vector.extract_strided_slice %338 {offsets = [0, 32], sizes = [2, 32], strides = [1, 1]} : vector<2x64xf32> to vector<2x32xf32>
    %345 = arith.index_cast %301 : i32 to index
    %c0_103 = arith.constant 0 : index
    %c0_104 = arith.constant 0 : index
    %346 = vector.load %arg11[%345, %c0_103, %c0_104] : memref<8x2x32xf32, #tpu.memory_space<vmem>>, vector<1x2x32xf32>
    %347 = vector.shape_cast %346 : vector<1x2x32xf32> to vector<2x32xf32>
    %348 = vector.shape_cast %344 : vector<2x32xf32> to vector<1x2x32xf32>
    tpu.vector_store %arg11[%345, %c0_103, %c0_104], %348 {strides = array<i32>} : memref<8x2x32xf32, #tpu.memory_space<vmem>>, vector<1x2x32xf32>,
    %c7_i32_105 = arith.constant 7 : i32
    %c7_i32_106 = arith.constant 7 : i32
    %349 = arith.subi %c7_i32_106, %c7_i32_105 : i32
    %350 = arith.index_cast %c7_i32_105 : i32 to index
    %c0_107 = arith.constant 0 : index
    %c0_108 = arith.constant 0 : index
    %351 = vector.load %arg9[%350, %c0_107, %c0_108] : memref<8x2x256xf32, #tpu.memory_space<vmem>>, vector<1x2x256xf32>
    %352 = vector.shape_cast %351 : vector<1x2x256xf32> to vector<2x256xf32>
    %353 = arith.index_cast %349 : i32 to index
    %c0_109 = arith.constant 0 : index
    %c0_110 = arith.constant 0 : index
    %354 = vector.load %arg9[%353, %c0_109, %c0_110] : memref<8x2x256xf32, #tpu.memory_space<vmem>>, vector<1x2x256xf32>
    %355 = vector.shape_cast %354 : vector<1x2x256xf32> to vector<2x256xf32>
    %356 = arith.subf %352, %355 : vector<2x256xf32>
    %357 = vector.broadcast %10 : vector<1x256xf32> to vector<2x256xf32>
    %358 = arith.mulf %357, %356 : vector<2x256xf32>
    %359 = arith.addf %355, %358 : vector<2x256xf32>
    %cst_111 = arith.constant dense<0.000000e+00> : vector<2x256xf32>
    %360 = tpu.matmul %338, %9, %cst_111 {dimension_numbers = #tpu.dot_dimension_numbers<[1], [0], [0], [1], [0, 0, 1, 1], [], []>} : vector<2x64xf32>, vector<64x256xf32>, vector<2x256xf32> -> vector<2x256xf32>
    %361 = arith.addf %359, %360 : vector<2x256xf32>
    %362 = vector.extract_strided_slice %361 {offsets = [0, 0], sizes = [2, 64], strides = [1, 1]} : vector<2x256xf32> to vector<2x64xf32>
    %363 = arith.negf %362 : vector<2x64xf32>
    %364 = math.exp %363 : vector<2x64xf32>
    %cst_112 = arith.constant 1.000000e+00 : f32
    %365 = vector.broadcast %cst_112 : f32 to vector<2x64xf32>
    %366 = arith.addf %365, %364 : vector<2x64xf32>
    %367 = arith.divf %365, %366 : vector<2x64xf32>
    %368 = vector.extract_strided_slice %361 {offsets = [0, 64], sizes = [2, 64], strides = [1, 1]} : vector<2x256xf32> to vector<2x64xf32>
    %369 = arith.negf %368 : vector<2x64xf32>
    %370 = math.exp %369 : vector<2x64xf32>
    %cst_113 = arith.constant 1.000000e+00 : f32
    %371 = vector.broadcast %cst_113 : f32 to vector<2x64xf32>
    %372 = arith.addf %371, %370 : vector<2x64xf32>
    %373 = arith.divf %371, %372 : vector<2x64xf32>
    %374 = vector.extract_strided_slice %361 {offsets = [0, 128], sizes = [2, 64], strides = [1, 1]} : vector<2x256xf32> to vector<2x64xf32>
    %375 = math.tanh %374 : vector<2x64xf32>
    %376 = vector.extract_strided_slice %361 {offsets = [0, 192], sizes = [2, 64], strides = [1, 1]} : vector<2x256xf32> to vector<2x64xf32>
    %377 = arith.negf %376 : vector<2x64xf32>
    %378 = math.exp %377 : vector<2x64xf32>
    %cst_114 = arith.constant 1.000000e+00 : f32
    %379 = vector.broadcast %cst_114 : f32 to vector<2x64xf32>
    %380 = arith.addf %379, %378 : vector<2x64xf32>
    %381 = arith.divf %379, %380 : vector<2x64xf32>
    %382 = arith.mulf %373, %336 : vector<2x64xf32>
    %383 = arith.mulf %367, %375 : vector<2x64xf32>
    %384 = arith.addf %382, %383 : vector<2x64xf32>
    %385 = math.tanh %384 : vector<2x64xf32>
    %386 = arith.mulf %381, %385 : vector<2x64xf32>
    %387 = vector.extract_strided_slice %386 {offsets = [0, 0], sizes = [2, 32], strides = [1, 1]} : vector<2x64xf32> to vector<2x32xf32>
    %388 = arith.index_cast %c7_i32_105 : i32 to index
    %c0_115 = arith.constant 0 : index
    %c0_116 = arith.constant 0 : index
    %389 = vector.load %arg10[%388, %c0_115, %c0_116] : memref<8x2x32xf32, #tpu.memory_space<vmem>>, vector<1x2x32xf32>
    %390 = vector.shape_cast %389 : vector<1x2x32xf32> to vector<2x32xf32>
    %391 = vector.shape_cast %387 : vector<2x32xf32> to vector<1x2x32xf32>
    tpu.vector_store %arg10[%388, %c0_115, %c0_116], %391 {strides = array<i32>} : memref<8x2x32xf32, #tpu.memory_space<vmem>>, vector<1x2x32xf32>,
    %392 = vector.extract_strided_slice %386 {offsets = [0, 32], sizes = [2, 32], strides = [1, 1]} : vector<2x64xf32> to vector<2x32xf32>
    %393 = arith.index_cast %349 : i32 to index
    %c0_117 = arith.constant 0 : index
    %c0_118 = arith.constant 0 : index
    %394 = vector.load %arg11[%393, %c0_117, %c0_118] : memref<8x2x32xf32, #tpu.memory_space<vmem>>, vector<1x2x32xf32>
    %395 = vector.shape_cast %394 : vector<1x2x32xf32> to vector<2x32xf32>
    %396 = vector.shape_cast %392 : vector<2x32xf32> to vector<1x2x32xf32>
    tpu.vector_store %arg11[%393, %c0_117, %c0_118], %396 {strides = array<i32>} : memref<8x2x32xf32, #tpu.memory_space<vmem>>, vector<1x2x32xf32>,
    %c8_i32 = arith.constant 8 : i32
    %c0_119 = arith.constant 0 : index
    %c0_120 = arith.constant 0 : index
    %c0_121 = arith.constant 0 : index
    %397 = vector.load %arg10[%c0_119, %c0_120, %c0_121] : memref<8x2x32xf32, #tpu.memory_space<vmem>>, vector<8x2x32xf32>
    %398 = vector.shape_cast %397 : vector<8x2x32xf32> to vector<16x32xf32>
    %c0_122 = arith.constant 0 : index
    %c0_123 = arith.constant 0 : index
    %399 = vector.load %arg5[%c0_122, %c0_123] : memref<32x4xf32, #tpu.memory_space<vmem>>, vector<32x4xf32>
    %cst_124 = arith.constant dense<0.000000e+00> : vector<16x4xf32>
    %400 = tpu.matmul %398, %399, %cst_124 {dimension_numbers = #tpu.dot_dimension_numbers<[1], [0], [0], [1], [0, 0, 1, 1], [], []>} : vector<16x32xf32>, vector<32x4xf32>, vector<16x4xf32> -> vector<16x4xf32>
    %c0_125 = arith.constant 0 : index
    %c0_126 = arith.constant 0 : index
    %c0_127 = arith.constant 0 : index
    %401 = vector.load %arg11[%c0_125, %c0_126, %c0_127] : memref<8x2x32xf32, #tpu.memory_space<vmem>>, vector<8x2x32xf32>
    %402 = vector.shape_cast %401 : vector<8x2x32xf32> to vector<16x32xf32>
    %c0_128 = arith.constant 0 : index
    %c0_129 = arith.constant 0 : index
    %403 = vector.load %arg6[%c0_128, %c0_129] : memref<32x4xf32, #tpu.memory_space<vmem>>, vector<32x4xf32>
    %cst_130 = arith.constant dense<0.000000e+00> : vector<16x4xf32>
    %404 = tpu.matmul %402, %403, %cst_130 {dimension_numbers = #tpu.dot_dimension_numbers<[1], [0], [0], [1], [0, 0, 1, 1], [], []>} : vector<16x32xf32>, vector<32x4xf32>, vector<16x4xf32> -> vector<16x4xf32>
    %405 = arith.addf %400, %404 : vector<16x4xf32>
    %c0_131 = arith.constant 0 : index
    %c0_132 = arith.constant 0 : index
    %406 = vector.load %arg7[%c0_131, %c0_132] : memref<1x4xf32, #tpu.memory_space<vmem>>, vector<1x4xf32>
    %407 = vector.broadcast %406 : vector<1x4xf32> to vector<16x4xf32>
    %408 = arith.addf %405, %407 : vector<16x4xf32>
    %409 = vector.shape_cast %408 : vector<16x4xf32> to vector<8x2x4xf32>
    %c0_133 = arith.constant 0 : index
    %c0_134 = arith.constant 0 : index
    %c0_135 = arith.constant 0 : index
    %410 = vector.load %arg8[%c0_133, %c0_134, %c0_135] : memref<8x2x4xf32, #tpu.memory_space<vmem>>, vector<8x2x4xf32>
    tpu.vector_store %arg8[%c0_133, %c0_134, %c0_135], %409 {strides = array<i32>} : memref<8x2x4xf32, #tpu.memory_space<vmem>>, vector<8x2x4xf32>,
    return
  }
}

</mosaic_0001>

<llo_original>
// kernel: rna_pair_lstm_forward.1
$region0: #{rna_pair_lstm_forward.1}
  #allocation0 [shape = 'u32[]', space=smem, size = 0x4, offset = 0x4, fixed_abs, tag = 'smem constant byte address 0x4 - core index']
  #allocation1 [shape = 'u32[144,128]{1,0:T(1,128)}', space=vmem, size = 0x12000, scoped, tag = 'internal scratch']
  #allocation2 [shape = 'f32[8,2,256]{2,1,0:T(2,128)}', space=vmem, size = 0x4000, scoped, tag = 'scratch operand']
  #allocation3 [shape = 'f32[8,2,32]{2,1,0:T(2,128)}', space=vmem, size = 0x2000, scoped, tag = 'scratch operand']
  #allocation4 [shape = 'f32[8,2,32]{2,1,0:T(2,128)}', space=vmem, size = 0x2000, scoped, tag = 'scratch operand']
  %s0 = inlined_call_operand.vmem [shape: f32[8,2,16], index: 0, kind: input, shape index: {}]
  %s1 = inlined_call_operand.vmem [shape: f32[16,256], index: 1, kind: input, shape index: {}]
  %s2 = inlined_call_operand.vmem [shape: f32[1,256], index: 2, kind: input, shape index: {}]
  %s3 = inlined_call_operand.vmem [shape: f32[64,256], index: 3, kind: input, shape index: {}]
  %s4 = inlined_call_operand.vmem [shape: f32[1,256], index: 4, kind: input, shape index: {}]
  %s5 = inlined_call_operand.vmem [shape: f32[32,4], index: 5, kind: input, shape index: {}]
  %s6 = inlined_call_operand.vmem [shape: f32[32,4], index: 6, kind: input, shape index: {}]
  %s7 = inlined_call_operand.vmem [shape: f32[1,4], index: 7, kind: input, shape index: {}]
  %s8 = inlined_call_operand.vmem [shape: f32[8,2,4], index: 8, kind: output, shape index: {}]
  %s9 = sld [smem:[#allocation0]]
  $region42: #{rna_pair_lstm_forward.1} parent=0
    _
  %s11 = ssub.s32 1, %s9
  %s12 = scalar_select 0, %s11, %s9
  // Predicated region
  $region2: #{rna_pair_lstm_forward.1} parent=0 // pred_check
    _
  $region3: #{rna_pair_lstm_forward.1} parent=0 // pred_check_branch
    %14 = sbr.rel (0) target = $region5
  $region4: #{rna_pair_lstm_forward.1} parent=0 // pred_region
    _
  $region5: #{rna_pair_lstm_forward.1} parent=0 // pred_fallthru
    _
  // Predicated region
  $region6: #{rna_pair_lstm_forward.1} parent=0 // pred_check
    _
  $region7: #{rna_pair_lstm_forward.1} parent=0 // pred_check_branch
    %16 = sbr.rel (0) target = $region9
  $region8: #{rna_pair_lstm_forward.1} parent=0 // pred_region
    _
  $region9: #{rna_pair_lstm_forward.1} parent=0 // pred_fallthru
    _
  // Predicated region
  $region10: #{rna_pair_lstm_forward.1} parent=0 // pred_check
    _
  $region11: #{rna_pair_lstm_forward.1} parent=0 // pred_check_branch
    %18 = sbr.rel (0) target = $region13
  $region12: #{rna_pair_lstm_forward.1} parent=0 // pred_region
    _
  $region13: #{rna_pair_lstm_forward.1} parent=0 // pred_fallthru
    _
  // Predicated region
  $region14: #{rna_pair_lstm_forward.1} parent=0 // pred_check
    _
  $region15: #{rna_pair_lstm_forward.1} parent=0 // pred_check_branch
    %20 = sbr.rel (0) target = $region17
  $region16: #{rna_pair_lstm_forward.1} parent=0 // pred_region
    _
  $region17: #{rna_pair_lstm_forward.1} parent=0 // pred_fallthru
    _
  // Predicated region
  $region18: #{rna_pair_lstm_forward.1} parent=0 // pred_check
    _
  $region19: #{rna_pair_lstm_forward.1} parent=0 // pred_check_branch
    %22 = sbr.rel (0) target = $region21
  $region20: #{rna_pair_lstm_forward.1} parent=0 // pred_region
    _
  $region21: #{rna_pair_lstm_forward.1} parent=0 // pred_fallthru
    _
  // Predicated region
  $region22: #{rna_pair_lstm_forward.1} parent=0 // pred_check
    _
  $region23: #{rna_pair_lstm_forward.1} parent=0 // pred_check_branch
    %24 = sbr.rel (0) target = $region25
  $region24: #{rna_pair_lstm_forward.1} parent=0 // pred_region
    _
  $region25: #{rna_pair_lstm_forward.1} parent=0 // pred_fallthru
    _
  // Predicated region
  $region26: #{rna_pair_lstm_forward.1} parent=0 // pred_check
    _
  $region27: #{rna_pair_lstm_forward.1} parent=0 // pred_check_branch
    %26 = sbr.rel (0) target = $region29
  $region28: #{rna_pair_lstm_forward.1} parent=0 // pred_region
    _
  $region29: #{rna_pair_lstm_forward.1} parent=0 // pred_fallthru
    _
  // Predicated region
  $region30: #{rna_pair_lstm_forward.1} parent=0 // pred_check
    _
  $region31: #{rna_pair_lstm_forward.1} parent=0 // pred_check_branch
    %28 = sbr.rel (0) target = $region33
  $region32: #{rna_pair_lstm_forward.1} parent=0 // pred_region
    _
  $region33: #{rna_pair_lstm_forward.1} parent=0 // pred_fallthru
    _
  %v29 = vld [vmem:[%s0] sm:$0x3]
  %v30 = vld [vmem:[%s0 + $0x2] sm:$0x3]
  %v31 = vld [vmem:[%s0 + $0x4] sm:$0x3]
  %v32 = vld [vmem:[%s0 + $0x6] sm:$0x3]
  %v33 = vld [vmem:[%s0 + $0x8] sm:$0x3]
  %v34 = vld [vmem:[%s0 + $0xa] sm:$0x3]
  %v35 = vld [vmem:[%s0 + $0xc] sm:$0x3]
  %v36 = vld [vmem:[%s0 + $0xe] sm:$0x3]
  %v37 = vld [vmem:[%s1] sm:$0xff]
  %v38 = vld [vmem:[%s1 + $0x8] sm:$0xff]
  %v39 = vld [vmem:[%s1 + $0x10] sm:$0xff]
  %v40 = vld [vmem:[%s1 + $0x18] sm:$0xff]
  %v41 = vld [vmem:[%s2] sm:$0x3]
  %v43 = vlaneseq
  %v44 = vshrl.u32 %v43, 7
  %v45 = vsub.s32 0, %v44
  %v46 = vrot.slane %v41, %v45
  %v47 = vlaneseq
  %v48 = vshrl.u32 %v47, 7
  %v49 = vsub.s32 1, %v48
  %v50 = vrot.slane %v41, %v49
  %v61 = vcombine.low %v29, %v30
  %v62 = vcombine.low %v31, %v32
  %v64 = vunpack.c.l.s4 1983009808
  %v65 = vunpack.c.0.s8 %v64
  %v66 = vlaneseq
  %v67 = vshrl.u32 %v66, 7
  %v68 = vsub.s32 %v65, %v67
  %v69 = vrot.slane %v61, %v68
  %v71 = vunpack.c.l.s4 1983009808
  %v72 = vunpack.c.0.s8 %v71
  %v73 = vlaneseq
  %v74 = vshrl.u32 %v73, 7
  %v75 = vsub.s32 %v72, %v74
  %v76 = vrot.slane %v62, %v75
  %v77 = vcombine.low %v69, %v76
  %v78 = vcombine.low %v33, %v34
  %v79 = vcombine.low %v35, %v36
  %v81 = vunpack.c.l.s4 1983009808
  %v82 = vunpack.c.0.s8 %v81
  %v83 = vlaneseq
  %v84 = vshrl.u32 %v83, 7
  %v85 = vsub.s32 %v82, %v84
  %v86 = vrot.slane %v78, %v85
  %v88 = vunpack.c.l.s4 1983009808
  %v89 = vunpack.c.0.s8 %v88
  %v90 = vlaneseq
  %v91 = vshrl.u32 %v90, 7
  %v92 = vsub.s32 %v89, %v91
  %v93 = vrot.slane %v79, %v92
  %v94 = vcombine.low %v86, %v93
  %vm95 = vcmask 130048
  %v96 = vsel %vm95, %v77, 0
  %v98 = vsel %vm95, %v94, 0
  %100 = vmatprep.subr.mxu0 0.0
  %101 = vmatpush1.msra.mxu0 0.0
  %102 = vmatprep.subr.mxu0 0.0
  %103 = vmatpush1.msra.mxu0 0.0
  %104 = vmatprep.subr.mxu0 0.0
  %105 = vmatpush1.msra.mxu0 0.0
  %106 = vmatprep.subr.mxu0 0.0
  %107 = vmatpush1.msra.mxu0 0.0
  %108 = vmatprep.subr.mxu0 0.0
  %109 = vmatpush1.msra.mxu0 0.0
  %110 = vmatprep.subr.mxu0 0.0
  %111 = vmatpush1.msra.mxu0 0.0
  %112 = vmatprep.subr.mxu0 0.0
  %113 = vmatpush1.msra.mxu0 0.0
  %114 = vmatprep.subr.mxu0 0.0
  %115 = vmatpush1.msra.mxu0 0.0
  %116 = vmatprep.subr.mxu0 0.0
  %117 = vmatpush1.msra.mxu0 0.0
  %118 = vmatprep.subr.mxu0 0.0
  %119 = vmatpush1.msra.mxu0 0.0
  %120 = vmatprep.subr.mxu0 0.0
  %121 = vmatpush1.msra.mxu0 0.0
  %122 = vmatprep.subr.mxu0 0.0
  %123 = vmatpush1.msra.mxu0 0.0
  %124 = vmatprep.subr.mxu0 0.0
  %125 = vmatpush1.msra.mxu0 0.0
  %126 = vmatprep.subr.mxu0 0.0
  %127 = vmatpush1.msra.mxu0 0.0
  %128 = vmatprep.subr.mxu0 %v40
  %129 = vmatpush1.msra.mxu0 %v39
  %130 = vmatprep.subr.mxu0 %v38
  %131 = vmatpush1.msra.mxu0 %v37
  %132 = vmatprep.subr.mxu0 0.0
  %133 = vmatpush2.msra.mxu0 0.0
  %134 = vmatprep.subr.mxu0 0.0
  %135 = vmatpush2.msra.mxu0 0.0
  %136 = vmatprep.subr.mxu0 0.0
  %137 = vmatpush2.msra.mxu0 0.0
  %138 = vmatprep.subr.mxu0 0.0
  %139 = vmatpush2.msra.mxu0 0.0
  %140 = vmatprep.subr.mxu0 0.0
  %141 = vmatpush2.msra.mxu0 0.0
  %142 = vmatprep.subr.mxu0 0.0
  %143 = vmatpush2.msra.mxu0 0.0
  %144 = vmatprep.subr.mxu0 0.0
  %145 = vmatpush2.msra.mxu0 0.0
  %146 = vmatprep.subr.mxu0 0.0
  %147 = vmatpush2.msra.mxu0 0.0
  %148 = vmatprep.subr.mxu0 0.0
  %149 = vmatpush2.msra.mxu0 0.0
  %150 = vmatprep.subr.mxu0 0.0
  %151 = vmatpush2.msra.mxu0 0.0
  %152 = vmatprep.subr.mxu0 0.0
  %153 = vmatpush2.msra.mxu0 0.0
  %154 = vmatprep.subr.mxu0 0.0
  %155 = vmatpush2.msra.mxu0 0.0
  %156 = vmatprep.subr.mxu0 0.0
  %157 = vmatpush2.msra.mxu0 0.0
  %158 = vmatprep.subr.mxu0 0.0
  %159 = vmatpush2.msra.mxu0 0.0
  %160 = vmatprep.subr.mxu0 0.0
  %161 = vmatpush2.msra.mxu0 0.0
  %162 = vmatprep.subr.mxu0 0.0
  %163 = vmatpush2.msra.mxu0 0.0
  %164 = vmatprep.mubr.f32.mxu0 0.0
  %165 = vmatmul.mubr.f32.gmra.mxu0 %v96
  %v166 = vpop.f32.mrf.mxu0
  %v167 = vadd.f32 %v46, %v166
  %v168 = vpop.f32.mrf.mxu0
  %v169 = vadd.f32 %v50, %v168
  %170 = vmatprep.mubr.f32.mxu0 0.0
  %171 = vmatmul.mubr.f32.gmra.mxu0 %v98
  %v172 = vpop.f32.mrf.mxu0
  %v173 = vadd.f32 %v46, %v172
  %v174 = vpop.f32.mrf.mxu0
  %v175 = vadd.f32 %v50, %v174
  %176 = vdwg.mxu0
  %v181 = vcombine.low %v167, %v169
  %v182 = vcombine.high %v167, %v169
  %v184 = vunpack.c.l.s4 1983009808
  %v185 = vunpack.c.0.s8 %v184
  %v186 = vlaneseq
  %v187 = vshrl.u32 %v186, 7
  %v188 = vsub.s32 %v185, %v187
  %v189 = vrot.slane %v181, %v188
  %v191 = vunpack.c.l.s4 1983009808
  %v192 = vunpack.c.0.s8 %v191
  %v193 = vlaneseq
  %v194 = vshrl.u32 %v193, 7
  %v195 = vsub.s32 %v192, %v194
  %v196 = vrot.slane %v182, %v195
  %v197 = vcombine.high %v189, %v189
  %v198 = vcombine.high %v196, %v196
  %v199 = vcombine.low %v173, %v175
  %v200 = vcombine.high %v173, %v175
  %v202 = vunpack.c.l.s4 1983009808
  %v203 = vunpack.c.0.s8 %v202
  %v204 = vlaneseq
  %v205 = vshrl.u32 %v204, 7
  %v206 = vsub.s32 %v203, %v205
  %v207 = vrot.slane %v199, %v206
  %v209 = vunpack.c.l.s4 1983009808
  %v210 = vunpack.c.0.s8 %v209
  %v211 = vlaneseq
  %v212 = vshrl.u32 %v211, 7
  %v213 = vsub.s32 %v210, %v212
  %v214 = vrot.slane %v200, %v213
  %v215 = vcombine.high %v207, %v207
  %v216 = vcombine.high %v214, %v214
  %225 = vst [vmem:[#allocation2] sm:$0xf] %v189
  %226 = vst [vmem:[#allocation2 + $0x4] sm:$0xf] %v197
  %227 = vst [vmem:[#allocation2 + $0x8] sm:$0xf] %v196
  %228 = vst [vmem:[#allocation2 + $0xc] sm:$0xf] %v198
  %229 = vst [vmem:[#allocation2 + $0x10] sm:$0xf] %v207
  %230 = vst [vmem:[#allocation2 + $0x14] sm:$0xf] %v215
  %231 = vst [vmem:[#allocation2 + $0x18] sm:$0xf] %v214
  %232 = vst [vmem:[#allocation2 + $0x1c] sm:$0xf] %v216
  %v233 = vld [vmem:[%s3] sm:$0xff]
  %v234 = vld [vmem:[%s3 + $0x8] sm:$0xff]
  %v235 = vld [vmem:[%s3 + $0x10] sm:$0xff]
  %v236 = vld [vmem:[%s3 + $0x18] sm:$0xff]
  %v237 = vld [vmem:[%s3 + $0x20] sm:$0xff]
  %v238 = vld [vmem:[%s3 + $0x28] sm:$0xff]
  %v239 = vld [vmem:[%s3 + $0x30] sm:$0xff]
  %v240 = vld [vmem:[%s3 + $0x38] sm:$0xff]
  %v241 = vld [vmem:[%s3 + $0x40] sm:$0xff]
  %v242 = vld [vmem:[%s3 + $0x48] sm:$0xff]
  %v243 = vld [vmem:[%s3 + $0x50] sm:$0xff]
  %v244 = vld [vmem:[%s3 + $0x58] sm:$0xff]
  %v245 = vld [vmem:[%s3 + $0x60] sm:$0xff]
  %v246 = vld [vmem:[%s3 + $0x68] sm:$0xff]
  %v247 = vld [vmem:[%s3 + $0x70] sm:$0xff]
  %v248 = vld [vmem:[%s3 + $0x78] sm:$0xff]
  %v249 = vld [vmem:[%s4] sm:$0x3]
  %v250 = vld [vmem:[#allocation2] sm:$0xf]
  %s251 = scalar_lea.vmem [#allocation2], 28
  %v252 = vld [vmem:[%s251] sm:$0xf]
  %v253 = vsub.f32 %v250, %v252
  %v255 = vlaneseq
  %v256 = vshrl.u32 %v255, 7
  %v257 = vsub.s32 0, %v256
  %v258 = vrot.slane %v249, %v257
  %v259 = vlaneseq
  %v260 = vshrl.u32 %v259, 7
  %v261 = vsub.s32 1, %v260
  %v262 = vrot.slane %v249, %v261
  %v267 = vunpack.c.l.s4 1983009808
  %v268 = vunpack.c.0.s8 %v267
  %v269 = vlaneseq
  %v270 = vshrl.u32 %v269, 7
  %v271 = vsub.s32 %v268, %v270
  %v272 = vrot.slane %v253, %v271
  %v273 = vcombine.high %v272, %v272
  %v276 = vmul.f32 %v258, %v272
  %v277 = vmul.f32 %v262, %v273
  %v280 = vcombine.low %v276, %v277
  %v282 = vunpack.c.l.s4 1983009808
  %v283 = vunpack.c.0.s8 %v282
  %v284 = vlaneseq
  %v285 = vshrl.u32 %v284, 7
  %v286 = vsub.s32 %v283, %v285
  %v287 = vrot.slane %v280, %v286
  %v289 = vadd.f32 %v252, %v287
  %vm290 = vcmask 523264
  %v292 = vsel %vm290, 0.0, 0
  %294 = vmatprep.subr.mxu0 0.0
  %295 = vmatpush1.msra.mxu0 0.0
  %296 = vmatprep.subr.mxu0 0.0
  %297 = vmatpush1.msra.mxu0 0.0
  %298 = vmatprep.subr.mxu0 0.0
  %299 = vmatpush1.msra.mxu0 0.0
  %300 = vmatprep.subr.mxu0 0.0
  %301 = vmatpush1.msra.mxu0 0.0
  %302 = vmatprep.subr.mxu0 0.0
  %303 = vmatpush1.msra.mxu0 0.0
  %304 = vmatprep.subr.mxu0 0.0
  %305 = vmatpush1.msra.mxu0 0.0
  %306 = vmatprep.subr.mxu0 0.0
  %307 = vmatpush1.msra.mxu0 0.0
  %308 = vmatprep.subr.mxu0 0.0
  %309 = vmatpush1.msra.mxu0 0.0
  %310 = vmatprep.subr.mxu0 %v248
  %311 = vmatpush1.msra.mxu0 %v247
  %312 = vmatprep.subr.mxu0 %v246
  %313 = vmatpush1.msra.mxu0 %v245
  %314 = vmatprep.subr.mxu0 %v244
  %315 = vmatpush1.msra.mxu0 %v243
  %316 = vmatprep.subr.mxu0 %v242
  %317 = vmatpush1.msra.mxu0 %v241
  %318 = vmatprep.subr.mxu0 %v240
  %319 = vmatpush1.msra.mxu0 %v239
  %320 = vmatprep.subr.mxu0 %v238
  %321 = vmatpush1.msra.mxu0 %v237
  %322 = vmatprep.subr.mxu0 %v236
  %323 = vmatpush1.msra.mxu0 %v235
  %324 = vmatprep.subr.mxu0 %v234
  %325 = vmatpush1.msra.mxu0 %v233
  %326 = vmatprep.subr.mxu0 0.0
  %327 = vmatpush2.msra.mxu0 0.0
  %328 = vmatprep.subr.mxu0 0.0
  %329 = vmatpush2.msra.mxu0 0.0
  %330 = vmatprep.subr.mxu0 0.0
  %331 = vmatpush2.msra.mxu0 0.0
  %332 = vmatprep.subr.mxu0 0.0
  %333 = vmatpush2.msra.mxu0 0.0
  %334 = vmatprep.subr.mxu0 0.0
  %335 = vmatpush2.msra.mxu0 0.0
  %336 = vmatprep.subr.mxu0 0.0
  %337 = vmatpush2.msra.mxu0 0.0
  %338 = vmatprep.subr.mxu0 0.0
  %339 = vmatpush2.msra.mxu0 0.0
  %340 = vmatprep.subr.mxu0 0.0
  %341 = vmatpush2.msra.mxu0 0.0
  %342 = vmatprep.subr.mxu0 0.0
  %343 = vmatpush2.msra.mxu0 0.0
  %344 = vmatprep.subr.mxu0 0.0
  %345 = vmatpush2.msra.mxu0 0.0
  %346 = vmatprep.subr.mxu0 0.0
  %347 = vmatpush2.msra.mxu0 0.0
  %348 = vmatprep.subr.mxu0 0.0
  %349 = vmatpush2.msra.mxu0 0.0
  %350 = vmatprep.subr.mxu0 0.0
  %351 = vmatpush2.msra.mxu0 0.0
  %352 = vmatprep.subr.mxu0 0.0
  %353 = vmatpush2.msra.mxu0 0.0
  %354 = vmatprep.subr.mxu0 0.0
  %355 = vmatpush2.msra.mxu0 0.0
  %356 = vmatprep.subr.mxu0 0.0
  %357 = vmatpush2.msra.mxu0 0.0
  %358 = vmatprep.mubr.f32.mxu0 0.0
  %359 = vmatmul.mubr.f32.gmra.mxu0 %v292
  %v360 = vpop.f32.mrf.mxu0
  %v361 = vadd.f32 0.0, %v360
  %v362 = vpop.f32.mrf.mxu0
  %v363 = vadd.f32 0.0, %v362
  %364 = vdwg.mxu0
  %v367 = vcombine.low %v361, %v363
  %v369 = vunpack.c.l.s4 1983009808
  %v370 = vunpack.c.0.s8 %v369
  %v371 = vlaneseq
  %v372 = vshrl.u32 %v371, 7
  %v373 = vsub.s32 %v370, %v372
  %v374 = vrot.slane %v367, %v373
  %v376 = vadd.f32 %v289, %v374
  %v377 = vxor.u32 %v376, 2147483648
  %v378 = vmul.f32 %v377, 1.442695
  %v379 = vpow.pop %v378
  %v380 = vadd.f32 %v379, 1.0
  %v381 = vrcp.pop %v380
  %v382 = vmul.f32 1.0, %v381
  %v384 = vrot.slane %v376, 2
  %v386 = vtanh.pop %v384
  %387 = vrot.lane.b32.xlu0 %v376, 64
  %v388 = vpop.permute.xlu0 %387
  %v389 = vrot.slane %v388, 2
  %v391 = vxor.u32 %v389, 2147483648
  %v392 = vmul.f32 %v391, 1.442695
  %v393 = vpow.pop %v392
  %v394 = vadd.f32 %v393, 1.0
  %v395 = vrcp.pop %v394
  %v396 = vmul.f32 1.0, %v395
  %v397 = vmul.f32 %v382, 0.0
  %v398 = vmul.f32 %v382, %v386
  %400 = vrot.lane.b32.xlu0 %v398, 64
  %v401 = vpop.permute.xlu0 %400
  %v403 = vadd.f32 %v397, %v401
  %v404 = vtanh.pop %v403
  %406 = vrot.lane.b32.xlu0 %v404, 64
  %v407 = vpop.permute.xlu0 %406
  %v409 = vmul.f32 %v396, %v407
  %vm410 = vcmask 254976
  %411 = vst.msk [vmem:[#allocation3] sm:$0x3] %vm410, %v409
  %v414 = vunpack.c.l.s4 1983009808
  %v415 = vunpack.c.0.s8 %v414
  %v416 = vlaneseq
  %v417 = vshrl.u32 %v416, 7
  %v418 = vsub.s32 %v415, %v417
  %v419 = vrot.slane %v409, %v418
  %420 = vrot.lane.b32.xlu0 %v419, 96
  %v421 = vpop.permute.xlu0 %420
  %s423 = scalar_lea.vmem [#allocation4], 14
  %424 = vst.msk [vmem:[%s423] sm:$0x3] %vm410, %v421
  %s425 = scalar_lea.vmem [#allocation2], 4
  %v426 = vld [vmem:[%s425] sm:$0xf]
  %s427 = scalar_lea.vmem [#allocation2], 24
  %v428 = vld [vmem:[%s427] sm:$0xf]
  %v429 = vsub.f32 %v426, %v428
  %v432 = vunpack.c.l.s4 1983009808
  %v433 = vunpack.c.0.s8 %v432
  %v434 = vlaneseq
  %v435 = vshrl.u32 %v434, 7
  %v436 = vsub.s32 %v433, %v435
  %v437 = vrot.slane %v429, %v436
  %v438 = vcombine.high %v437, %v437
  %v441 = vmul.f32 %v258, %v437
  %v442 = vmul.f32 %v262, %v438
  %v445 = vcombine.low %v441, %v442
  %v447 = vunpack.c.l.s4 1983009808
  %v448 = vunpack.c.0.s8 %v447
  %v449 = vlaneseq
  %v450 = vshrl.u32 %v449, 7
  %v451 = vsub.s32 %v448, %v450
  %v452 = vrot.slane %v445, %v451
  %v454 = vadd.f32 %v428, %v452
  %v455 = vsel %vm290, %v409, 0
  %457 = vmatprep.subr.mxu0 0.0
  %458 = vmatpush1.msra.mxu0 0.0
  %459 = vmatprep.subr.mxu0 0.0
  %460 = vmatpush1.msra.mxu0 0.0
  %461 = vmatprep.subr.mxu0 0.0
  %462 = vmatpush1.msra.mxu0 0.0
  %463 = vmatprep.subr.mxu0 0.0
  %464 = vmatpush1.msra.mxu0 0.0
  %465 = vmatprep.subr.mxu0 0.0
  %466 = vmatpush1.msra.mxu0 0.0
  %467 = vmatprep.subr.mxu0 0.0
  %468 = vmatpush1.msra.mxu0 0.0
  %469 = vmatprep.subr.mxu0 0.0
  %470 = vmatpush1.msra.mxu0 0.0
  %471 = vmatprep.subr.mxu0 0.0
  %472 = vmatpush1.msra.mxu0 0.0
  %473 = vmatprep.subr.mxu0 %v248
  %474 = vmatpush1.msra.mxu0 %v247
  %475 = vmatprep.subr.mxu0 %v246
  %476 = vmatpush1.msra.mxu0 %v245
  %477 = vmatprep.subr.mxu0 %v244
  %478 = vmatpush1.msra.mxu0 %v243
  %479 = vmatprep.subr.mxu0 %v242
  %480 = vmatpush1.msra.mxu0 %v241
  %481 = vmatprep.subr.mxu0 %v240
  %482 = vmatpush1.msra.mxu0 %v239
  %483 = vmatprep.subr.mxu0 %v238
  %484 = vmatpush1.msra.mxu0 %v237
  %485 = vmatprep.subr.mxu0 %v236
  %486 = vmatpush1.msra.mxu0 %v235
  %487 = vmatprep.subr.mxu0 %v234
  %488 = vmatpush1.msra.mxu0 %v233
  %489 = vmatprep.subr.mxu0 0.0
  %490 = vmatpush2.msra.mxu0 0.0
  %491 = vmatprep.subr.mxu0 0.0
  %492 = vmatpush2.msra.mxu0 0.0
  %493 = vmatprep.subr.mxu0 0.0
  %494 = vmatpush2.msra.mxu0 0.0
  %495 = vmatprep.subr.mxu0 0.0
  %496 = vmatpush2.msra.mxu0 0.0
  %497 = vmatprep.subr.mxu0 0.0
  %498 = vmatpush2.msra.mxu0 0.0
  %499 = vmatprep.subr.mxu0 0.0
  %500 = vmatpush2.msra.mxu0 0.0
  %501 = vmatprep.subr.mxu0 0.0
  %502 = vmatpush2.msra.mxu0 0.0
  %503 = vmatprep.subr.mxu0 0.0
  %504 = vmatpush2.msra.mxu0 0.0
  %505 = vmatprep.subr.mxu0 0.0
  %506 = vmatpush2.msra.mxu0 0.0
  %507 = vmatprep.subr.mxu0 0.0
  %508 = vmatpush2.msra.mxu0 0.0
  %509 = vmatprep.subr.mxu0 0.0
  %510 = vmatpush2.msra.mxu0 0.0
  %511 = vmatprep.subr.mxu0 0.0
  %512 = vmatpush2.msra.mxu0 0.0
  %513 = vmatprep.subr.mxu0 0.0
  %514 = vmatpush2.msra.mxu0 0.0
  %515 = vmatprep.subr.mxu0 0.0
  %516 = vmatpush2.msra.mxu0 0.0
  %517 = vmatprep.subr.mxu0 0.0
  %518 = vmatpush2.msra.mxu0 0.0
  %519 = vmatprep.subr.mxu0 0.0
  %520 = vmatpush2.msra.mxu0 0.0
  %521 = vmatprep.mubr.f32.mxu0 0.0
  %522 = vmatmul.mubr.f32.gmra.mxu0 %v455
  %v523 = vpop.f32.mrf.mxu0
  %v524 = vadd.f32 0.0, %v523
  %v525 = vpop.f32.mrf.mxu0
  %v526 = vadd.f32 0.0, %v525
  %527 = vdwg.mxu0
  %v530 = vcombine.low %v524, %v526
  %v532 = vunpack.c.l.s4 1983009808
  %v533 = vunpack.c.0.s8 %v532
  %v534 = vlaneseq
  %v535 = vshrl.u32 %v534, 7
  %v536 = vsub.s32 %v533, %v535
  %v537 = vrot.slane %v530, %v536
  %v539 = vadd.f32 %v454, %v537
  %v540 = vxor.u32 %v539, 2147483648
  %v541 = vmul.f32 %v540, 1.442695
  %v542 = vpow.pop %v541
  %v543 = vadd.f32 %v542, 1.0
  %v544 = vrcp.pop %v543
  %v545 = vmul.f32 1.0, %v544
  %v547 = vrot.slane %v539, 2
  %v549 = vtanh.pop %v547
  %550 = vrot.lane.b32.xlu0 %v539, 64
  %v551 = vpop.permute.xlu0 %550
  %v552 = vrot.slane %v551, 2
  %v554 = vxor.u32 %v552, 2147483648
  %v555 = vmul.f32 %v554, 1.442695
  %v556 = vpow.pop %v555
  %v557 = vadd.f32 %v556, 1.0
  %v558 = vrcp.pop %v557
  %v559 = vmul.f32 1.0, %v558
  %v560 = vmul.f32 %v545, %v403
  %v561 = vmul.f32 %v545, %v549
  %563 = vrot.lane.b32.xlu0 %v561, 64
  %v564 = vpop.permute.xlu0 %563
  %v566 = vadd.f32 %v560, %v564
  %v567 = vtanh.pop %v566
  %569 = vrot.lane.b32.xlu0 %v567, 64
  %v570 = vpop.permute.xlu0 %569
  %v572 = vmul.f32 %v559, %v570
  %s573 = scalar_lea.vmem [#allocation3], 2
  %574 = vst.msk [vmem:[%s573] sm:$0x3] %vm410, %v572
  %v577 = vunpack.c.l.s4 1983009808
  %v578 = vunpack.c.0.s8 %v577
  %v579 = vlaneseq
  %v580 = vshrl.u32 %v579, 7
  %v581 = vsub.s32 %v578, %v580
  %v582 = vrot.slane %v572, %v581
  %583 = vrot.lane.b32.xlu0 %v582, 96
  %v584 = vpop.permute.xlu0 %583
  %s586 = scalar_lea.vmem [#allocation4], 12
  %587 = vst.msk [vmem:[%s586] sm:$0x3] %vm410, %v584
  %s588 = scalar_lea.vmem [#allocation2], 8
  %v589 = vld [vmem:[%s588] sm:$0xf]
  %s590 = scalar_lea.vmem [#allocation2], 20
  %v591 = vld [vmem:[%s590] sm:$0xf]
  %v592 = vsub.f32 %v589, %v591
  %v595 = vunpack.c.l.s4 1983009808
  %v596 = vunpack.c.0.s8 %v595
  %v597 = vlaneseq
  %v598 = vshrl.u32 %v597, 7
  %v599 = vsub.s32 %v596, %v598
  %v600 = vrot.slane %v592, %v599
  %v601 = vcombine.high %v600, %v600
  %v604 = vmul.f32 %v258, %v600
  %v605 = vmul.f32 %v262, %v601
  %v608 = vcombine.low %v604, %v605
  %v610 = vunpack.c.l.s4 1983009808
  %v611 = vunpack.c.0.s8 %v610
  %v612 = vlaneseq
  %v613 = vshrl.u32 %v612, 7
  %v614 = vsub.s32 %v611, %v613
  %v615 = vrot.slane %v608, %v614
  %v617 = vadd.f32 %v591, %v615
  %v618 = vsel %vm290, %v572, 0
  %620 = vmatprep.subr.mxu0 0.0
  %621 = vmatpush1.msra.mxu0 0.0
  %622 = vmatprep.subr.mxu0 0.0
  %623 = vmatpush1.msra.mxu0 0.0
  %624 = vmatprep.subr.mxu0 0.0
  %625 = vmatpush1.msra.mxu0 0.0
  %626 = vmatprep.subr.mxu0 0.0
  %627 = vmatpush1.msra.mxu0 0.0
  %628 = vmatprep.subr.mxu0 0.0
  %629 = vmatpush1.msra.mxu0 0.0
  %630 = vmatprep.subr.mxu0 0.0
  %631 = vmatpush1.msra.mxu0 0.0
  %632 = vmatprep.subr.mxu0 0.0
  %633 = vmatpush1.msra.mxu0 0.0
  %634 = vmatprep.subr.mxu0 0.0
  %635 = vmatpush1.msra.mxu0 0.0
  %636 = vmatprep.subr.mxu0 %v248
  %637 = vmatpush1.msra.mxu0 %v247
  %638 = vmatprep.subr.mxu0 %v246
  %639 = vmatpush1.msra.mxu0 %v245
  %640 = vmatprep.subr.mxu0 %v244
  %641 = vmatpush1.msra.mxu0 %v243
  %642 = vmatprep.subr.mxu0 %v242
  %643 = vmatpush1.msra.mxu0 %v241
  %644 = vmatprep.subr.mxu0 %v240
  %645 = vmatpush1.msra.mxu0 %v239
  %646 = vmatprep.subr.mxu0 %v238
  %647 = vmatpush1.msra.mxu0 %v237
  %648 = vmatprep.subr.mxu0 %v236
  %649 = vmatpush1.msra.mxu0 %v235
  %650 = vmatprep.subr.mxu0 %v234
  %651 = vmatpush1.msra.mxu0 %v233
  %652 = vmatprep.subr.mxu0 0.0
  %653 = vmatpush2.msra.mxu0 0.0
  %654 = vmatprep.subr.mxu0 0.0
  %655 = vmatpush2.msra.mxu0 0.0
  %656 = vmatprep.subr.mxu0 0.0
  %657 = vmatpush2.msra.mxu0 0.0
  %658 = vmatprep.subr.mxu0 0.0
  %659 = vmatpush2.msra.mxu0 0.0
  %660 = vmatprep.subr.mxu0 0.0
  %661 = vmatpush2.msra.mxu0 0.0
  %662 = vmatprep.subr.mxu0 0.0
  %663 = vmatpush2.msra.mxu0 0.0
  %664 = vmatprep.subr.mxu0 0.0
  %665 = vmatpush2.msra.mxu0 0.0
  %666 = vmatprep.subr.mxu0 0.0
  %667 = vmatpush2.msra.mxu0 0.0
  %668 = vmatprep.subr.mxu0 0.0
  %669 = vmatpush2.msra.mxu0 0.0
  %670 = vmatprep.subr.mxu0 0.0
  %671 = vmatpush2.msra.mxu0 0.0
  %672 = vmatprep.subr.mxu0 0.0
  %673 = vmatpush2.msra.mxu0 0.0
  %674 = vmatprep.subr.mxu0 0.0
  %675 = vmatpush2.msra.mxu0 0.0
  %676 = vmatprep.subr.mxu0 0.0
  %677 = vmatpush2.msra.mxu0 0.0
  %678 = vmatprep.subr.mxu0 0.0
  %679 = vmatpush2.msra.mxu0 0.0
  %680 = vmatprep.subr.mxu0 0.0
  %681 = vmatpush2.msra.mxu0 0.0
  %682 = vmatprep.subr.mxu0 0.0
  %683 = vmatpush2.msra.mxu0 0.0
  %684 = vmatprep.mubr.f32.mxu0 0.0
  %685 = vmatmul.mubr.f32.gmra.mxu0 %v618
  %v686 = vpop.f32.mrf.mxu0
  %v687 = vadd.f32 0.0, %v686
  %v688 = vpop.f32.mrf.mxu0
  %v689 = vadd.f32 0.0, %v688
  %690 = vdwg.mxu0
  %v693 = vcombine.low %v687, %v689
  %v695 = vunpack.c.l.s4 1983009808
  %v696 = vunpack.c.0.s8 %v695
  %v697 = vlaneseq
  %v698 = vshrl.u32 %v697, 7
  %v699 = vsub.s32 %v696, %v698
  %v700 = vrot.slane %v693, %v699
  %v702 = vadd.f32 %v617, %v700
  %v703 = vxor.u32 %v702, 2147483648
  %v704 = vmul.f32 %v703, 1.442695
  %v705 = vpow.pop %v704
  %v706 = vadd.f32 %v705, 1.0
  %v707 = vrcp.pop %v706
  %v708 = vmul.f32 1.0, %v707
  %v710 = vrot.slane %v702, 2
  %v712 = vtanh.pop %v710
  %713 = vrot.lane.b32.xlu0 %v702, 64
  %v714 = vpop.permute.xlu0 %713
  %v715 = vrot.slane %v714, 2
  %v717 = vxor.u32 %v715, 2147483648
  %v718 = vmul.f32 %v717, 1.442695
  %v719 = vpow.pop %v718
  %v720 = vadd.f32 %v719, 1.0
  %v721 = vrcp.pop %v720
  %v722 = vmul.f32 1.0, %v721
  %v723 = vmul.f32 %v708, %v566
  %v724 = vmul.f32 %v708, %v712
  %726 = vrot.lane.b32.xlu0 %v724, 64
  %v727 = vpop.permute.xlu0 %726
  %v729 = vadd.f32 %v723, %v727
  %v730 = vtanh.pop %v729
  %732 = vrot.lane.b32.xlu0 %v730, 64
  %v733 = vpop.permute.xlu0 %732
  %v735 = vmul.f32 %v722, %v733
  %s736 = scalar_lea.vmem [#allocation3], 4
  %737 = vst.msk [vmem:[%s736] sm:$0x3] %vm410, %v735
  %v740 = vunpack.c.l.s4 1983009808
  %v741 = vunpack.c.0.s8 %v740
  %v742 = vlaneseq
  %v743 = vshrl.u32 %v742, 7
  %v744 = vsub.s32 %v741, %v743
  %v745 = vrot.slane %v735, %v744
  %746 = vrot.lane.b32.xlu0 %v745, 96
  %v747 = vpop.permute.xlu0 %746
  %s749 = scalar_lea.vmem [#allocation4], 10
  %750 = vst.msk [vmem:[%s749] sm:$0x3] %vm410, %v747
  %s751 = scalar_lea.vmem [#allocation2], 12
  %v752 = vld [vmem:[%s751] sm:$0xf]
  %s753 = scalar_lea.vmem [#allocation2], 16
  %v754 = vld [vmem:[%s753] sm:$0xf]
  %v755 = vsub.f32 %v752, %v754
  %v758 = vunpack.c.l.s4 1983009808
  %v759 = vunpack.c.0.s8 %v758
  %v760 = vlaneseq
  %v761 = vshrl.u32 %v760, 7
  %v762 = vsub.s32 %v759, %v761
  %v763 = vrot.slane %v755, %v762
  %v764 = vcombine.high %v763, %v763
  %v767 = vmul.f32 %v258, %v763
  %v768 = vmul.f32 %v262, %v764
  %v771 = vcombine.low %v767, %v768
  %v773 = vunpack.c.l.s4 1983009808
  %v774 = vunpack.c.0.s8 %v773
  %v775 = vlaneseq
  %v776 = vshrl.u32 %v775, 7
  %v777 = vsub.s32 %v774, %v776
  %v778 = vrot.slane %v771, %v777
  %v780 = vadd.f32 %v754, %v778
  %v781 = vsel %vm290, %v735, 0
  %783 = vmatprep.subr.mxu0 0.0
  %784 = vmatpush1.msra.mxu0 0.0
  %785 = vmatprep.subr.mxu0 0.0
  %786 = vmatpush1.msra.mxu0 0.0
  %787 = vmatprep.subr.mxu0 0.0
  %788 = vmatpush1.msra.mxu0 0.0
  %789 = vmatprep.subr.mxu0 0.0
  %790 = vmatpush1.msra.mxu0 0.0
  %791 = vmatprep.subr.mxu0 0.0
  %792 = vmatpush1.msra.mxu0 0.0
  %793 = vmatprep.subr.mxu0 0.0
  %794 = vmatpush1.msra.mxu0 0.0
  %795 = vmatprep.subr.mxu0 0.0
  %796 = vmatpush1.msra.mxu0 0.0
  %797 = vmatprep.subr.mxu0 0.0
  %798 = vmatpush1.msra.mxu0 0.0
  %799 = vmatprep.subr.mxu0 %v248
  %800 = vmatpush1.msra.mxu0 %v247
  %801 = vmatprep.subr.mxu0 %v246
  %802 = vmatpush1.msra.mxu0 %v245
  %803 = vmatprep.subr.mxu0 %v244
  %804 = vmatpush1.msra.mxu0 %v243
  %805 = vmatprep.subr.mxu0 %v242
  %806 = vmatpush1.msra.mxu0 %v241
  %807 = vmatprep.subr.mxu0 %v240
  %808 = vmatpush1.msra.mxu0 %v239
  %809 = vmatprep.subr.mxu0 %v238
  %810 = vmatpush1.msra.mxu0 %v237
  %811 = vmatprep.subr.mxu0 %v236
  %812 = vmatpush1.msra.mxu0 %v235
  %813 = vmatprep.subr.mxu0 %v234
  %814 = vmatpush1.msra.mxu0 %v233
  %815 = vmatprep.subr.mxu0 0.0
  %816 = vmatpush2.msra.mxu0 0.0
  %817 = vmatprep.subr.mxu0 0.0
  %818 = vmatpush2.msra.mxu0 0.0
  %819 = vmatprep.subr.mxu0 0.0
  %820 = vmatpush2.msra.mxu0 0.0
  %821 = vmatprep.subr.mxu0 0.0
  %822 = vmatpush2.msra.mxu0 0.0
  %823 = vmatprep.subr.mxu0 0.0
  %824 = vmatpush2.msra.mxu0 0.0
  %825 = vmatprep.subr.mxu0 0.0
  %826 = vmatpush2.msra.mxu0 0.0
  %827 = vmatprep.subr.mxu0 0.0
  %828 = vmatpush2.msra.mxu0 0.0
  %829 = vmatprep.subr.mxu0 0.0
  %830 = vmatpush2.msra.mxu0 0.0
  %831 = vmatprep.subr.mxu0 0.0
  %832 = vmatpush2.msra.mxu0 0.0
  %833 = vmatprep.subr.mxu0 0.0
  %834 = vmatpush2.msra.mxu0 0.0
  %835 = vmatprep.subr.mxu0 0.0
  %836 = vmatpush2.msra.mxu0 0.0
  %837 = vmatprep.subr.mxu0 0.0
  %838 = vmatpush2.msra.mxu0 0.0
  %839 = vmatprep.subr.mxu0 0.0
  %840 = vmatpush2.msra.mxu0 0.0
  %841 = vmatprep.subr.mxu0 0.0
  %842 = vmatpush2.msra.mxu0 0.0
  %843 = vmatprep.subr.mxu0 0.0
  %844 = vmatpush2.msra.mxu0 0.0
  %845 = vmatprep.subr.mxu0 0.0
  %846 = vmatpush2.msra.mxu0 0.0
  %847 = vmatprep.mubr.f32.mxu0 0.0
  %848 = vmatmul.mubr.f32.gmra.mxu0 %v781
  %v849 = vpop.f32.mrf.mxu0
  %v850 = vadd.f32 0.0, %v849
  %v851 = vpop.f32.mrf.mxu0
  %v852 = vadd.f32 0.0, %v851
  %853 = vdwg.mxu0
  %v856 = vcombine.low %v850, %v852
  %v858 = vunpack.c.l.s4 1983009808
  %v859 = vunpack.c.0.s8 %v858
  %v860 = vlaneseq
  %v861 = vshrl.u32 %v860, 7
  %v862 = vsub.s32 %v859, %v861
  %v863 = vrot.slane %v856, %v862
  %v865 = vadd.f32 %v780, %v863
  %v866 = vxor.u32 %v865, 2147483648
  %v867 = vmul.f32 %v866, 1.442695
  %v868 = vpow.pop %v867
  %v869 = vadd.f32 %v868, 1.0
  %v870 = vrcp.pop %v869
  %v871 = vmul.f32 1.0, %v870
  %v873 = vrot.slane %v865, 2
  %v875 = vtanh.pop %v873
  %876 = vrot.lane.b32.xlu0 %v865, 64
  %v877 = vpop.permute.xlu0 %876
  %v878 = vrot.slane %v877, 2
  %v880 = vxor.u32 %v878, 2147483648
  %v881 = vmul.f32 %v880, 1.442695
  %v882 = vpow.pop %v881
  %v883 = vadd.f32 %v882, 1.0
  %v884 = vrcp.pop %v883
  %v885 = vmul.f32 1.0, %v884
  %v886 = vmul.f32 %v871, %v729
  %v887 = vmul.f32 %v871, %v875
  %889 = vrot.lane.b32.xlu0 %v887, 64
  %v890 = vpop.permute.xlu0 %889
  %v892 = vadd.f32 %v886, %v890
  %v893 = vtanh.pop %v892
  %895 = vrot.lane.b32.xlu0 %v893, 64
  %v896 = vpop.permute.xlu0 %895
  %v898 = vmul.f32 %v885, %v896
  %s899 = scalar_lea.vmem [#allocation3], 6
  %900 = vst.msk [vmem:[%s899] sm:$0x3] %vm410, %v898
  %v903 = vunpack.c.l.s4 1983009808
  %v904 = vunpack.c.0.s8 %v903
  %v905 = vlaneseq
  %v906 = vshrl.u32 %v905, 7
  %v907 = vsub.s32 %v904, %v906
  %v908 = vrot.slane %v898, %v907
  %909 = vrot.lane.b32.xlu0 %v908, 96
  %v910 = vpop.permute.xlu0 %909
  %s912 = scalar_lea.vmem [#allocation4], 8
  %913 = vst.msk [vmem:[%s912] sm:$0x3] %vm410, %v910
  %v914 = vld [vmem:[%s753] sm:$0xf]
  %v915 = vld [vmem:[%s751] sm:$0xf]
  %v916 = vsub.f32 %v914, %v915
  %v919 = vunpack.c.l.s4 1983009808
  %v920 = vunpack.c.0.s8 %v919
  %v921 = vlaneseq
  %v922 = vshrl.u32 %v921, 7
  %v923 = vsub.s32 %v920, %v922
  %v924 = vrot.slane %v916, %v923
  %v925 = vcombine.high %v924, %v924
  %v928 = vmul.f32 %v258, %v924
  %v929 = vmul.f32 %v262, %v925
  %v932 = vcombine.low %v928, %v929
  %v934 = vunpack.c.l.s4 1983009808
  %v935 = vunpack.c.0.s8 %v934
  %v936 = vlaneseq
  %v937 = vshrl.u32 %v936, 7
  %v938 = vsub.s32 %v935, %v937
  %v939 = vrot.slane %v932, %v938
  %v941 = vadd.f32 %v915, %v939
  %v942 = vsel %vm290, %v898, 0
  %944 = vmatprep.subr.mxu0 0.0
  %945 = vmatpush1.msra.mxu0 0.0
  %946 = vmatprep.subr.mxu0 0.0
  %947 = vmatpush1.msra.mxu0 0.0
  %948 = vmatprep.subr.mxu0 0.0
  %949 = vmatpush1.msra.mxu0 0.0
  %950 = vmatprep.subr.mxu0 0.0
  %951 = vmatpush1.msra.mxu0 0.0
  %952 = vmatprep.subr.mxu0 0.0
  %953 = vmatpush1.msra.mxu0 0.0
  %954 = vmatprep.subr.mxu0 0.0
  %955 = vmatpush1.msra.mxu0 0.0
  %956 = vmatprep.subr.mxu0 0.0
  %957 = vmatpush1.msra.mxu0 0.0
  %958 = vmatprep.subr.mxu0 0.0
  %959 = vmatpush1.msra.mxu0 0.0
  %960 = vmatprep.subr.mxu0 %v248
  %961 = vmatpush1.msra.mxu0 %v247
  %962 = vmatprep.subr.mxu0 %v246
  %963 = vmatpush1.msra.mxu0 %v245
  %964 = vmatprep.subr.mxu0 %v244
  %965 = vmatpush1.msra.mxu0 %v243
  %966 = vmatprep.subr.mxu0 %v242
  %967 = vmatpush1.msra.mxu0 %v241
  %968 = vmatprep.subr.mxu0 %v240
  %969 = vmatpush1.msra.mxu0 %v239
  %970 = vmatprep.subr.mxu0 %v238
  %971 = vmatpush1.msra.mxu0 %v237
  %972 = vmatprep.subr.mxu0 %v236
  %973 = vmatpush1.msra.mxu0 %v235
  %974 = vmatprep.subr.mxu0 %v234
  %975 = vmatpush1.msra.mxu0 %v233
  %976 = vmatprep.subr.mxu0 0.0
  %977 = vmatpush2.msra.mxu0 0.0
  %978 = vmatprep.subr.mxu0 0.0
  %979 = vmatpush2.msra.mxu0 0.0
  %980 = vmatprep.subr.mxu0 0.0
  %981 = vmatpush2.msra.mxu0 0.0
  %982 = vmatprep.subr.mxu0 0.0
  %983 = vmatpush2.msra.mxu0 0.0
  %984 = vmatprep.subr.mxu0 0.0
  %985 = vmatpush2.msra.mxu0 0.0
  %986 = vmatprep.subr.mxu0 0.0
  %987 = vmatpush2.msra.mxu0 0.0
  %988 = vmatprep.subr.mxu0 0.0
  %989 = vmatpush2.msra.mxu0 0.0
  %990 = vmatprep.subr.mxu0 0.0
  %991 = vmatpush2.msra.mxu0 0.0
  %992 = vmatprep.subr.mxu0 0.0
  %993 = vmatpush2.msra.mxu0 0.0
  %994 = vmatprep.subr.mxu0 0.0
  %995 = vmatpush2.msra.mxu0 0.0
  %996 = vmatprep.subr.mxu0 0.0
  %997 = vmatpush2.msra.mxu0 0.0
  %998 = vmatprep.subr.mxu0 0.0
  %999 = vmatpush2.msra.mxu0 0.0
  %1000 = vmatprep.subr.mxu0 0.0
  %1001 = vmatpush2.msra.mxu0 0.0
  %1002 = vmatprep.subr.mxu0 0.0
  %1003 = vmatpush2.msra.mxu0 0.0
  %1004 = vmatprep.subr.mxu0 0.0
  %1005 = vmatpush2.msra.mxu0 0.0
  %1006 = vmatprep.subr.mxu0 0.0
  %1007 = vmatpush2.msra.mxu0 0.0
  %1008 = vmatprep.mubr.f32.mxu0 0.0
  %1009 = vmatmul.mubr.f32.gmra.mxu0 %v942
  %v1010 = vpop.f32.mrf.mxu0
  %v1011 = vadd.f32 0.0, %v1010
  %v1012 = vpop.f32.mrf.mxu0
  %v1013 = vadd.f32 0.0, %v1012
  %1014 = vdwg.mxu0
  %v1017 = vcombine.low %v1011, %v1013
  %v1019 = vunpack.c.l.s4 1983009808
  %v1020 = vunpack.c.0.s8 %v1019
  %v1021 = vlaneseq
  %v1022 = vshrl.u32 %v1021, 7
  %v1023 = vsub.s32 %v1020, %v1022
  %v1024 = vrot.slane %v1017, %v1023
  %v1026 = vadd.f32 %v941, %v1024
  %v1027 = vxor.u32 %v1026, 2147483648
  %v1028 = vmul.f32 %v1027, 1.442695
  %v1029 = vpow.pop %v1028
  %v1030 = vadd.f32 %v1029, 1.0
  %v1031 = vrcp.pop %v1030
  %v1032 = vmul.f32 1.0, %v1031
  %v1034 = vrot.slane %v1026, 2
  %v1036 = vtanh.pop %v1034
  %1037 = vrot.lane.b32.xlu0 %v1026, 64
  %v1038 = vpop.permute.xlu0 %1037
  %v1039 = vrot.slane %v1038, 2
  %v1041 = vxor.u32 %v1039, 2147483648
  %v1042 = vmul.f32 %v1041, 1.442695
  %v1043 = vpow.pop %v1042
  %v1044 = vadd.f32 %v1043, 1.0
  %v1045 = vrcp.pop %v1044
  %v1046 = vmul.f32 1.0, %v1045
  %v1047 = vmul.f32 %v1032, %v892
  %v1048 = vmul.f32 %v1032, %v1036
  %1050 = vrot.lane.b32.xlu0 %v1048, 64
  %v1051 = vpop.permute.xlu0 %1050
  %v1053 = vadd.f32 %v1047, %v1051
  %v1054 = vtanh.pop %v1053
  %1056 = vrot.lane.b32.xlu0 %v1054, 64
  %v1057 = vpop.permute.xlu0 %1056
  %v1059 = vmul.f32 %v1046, %v1057
  %s1060 = scalar_lea.vmem [#allocation3], 8
  %1061 = vst.msk [vmem:[%s1060] sm:$0x3] %vm410, %v1059
  %v1064 = vunpack.c.l.s4 1983009808
  %v1065 = vunpack.c.0.s8 %v1064
  %v1066 = vlaneseq
  %v1067 = vshrl.u32 %v1066, 7
  %v1068 = vsub.s32 %v1065, %v1067
  %v1069 = vrot.slane %v1059, %v1068
  %1070 = vrot.lane.b32.xlu0 %v1069, 96
  %v1071 = vpop.permute.xlu0 %1070
  %s1073 = scalar_lea.vmem [#allocation4], 6
  %1074 = vst.msk [vmem:[%s1073] sm:$0x3] %vm410, %v1071
  %v1075 = vld [vmem:[%s590] sm:$0xf]
  %v1076 = vld [vmem:[%s588] sm:$0xf]
  %v1077 = vsub.f32 %v1075, %v1076
  %v1080 = vunpack.c.l.s4 1983009808
  %v1081 = vunpack.c.0.s8 %v1080
  %v1082 = vlaneseq
  %v1083 = vshrl.u32 %v1082, 7
  %v1084 = vsub.s32 %v1081, %v1083
  %v1085 = vrot.slane %v1077, %v1084
  %v1086 = vcombine.high %v1085, %v1085
  %v1089 = vmul.f32 %v258, %v1085
  %v1090 = vmul.f32 %v262, %v1086
  %v1093 = vcombine.low %v1089, %v1090
  %v1095 = vunpack.c.l.s4 1983009808
  %v1096 = vunpack.c.0.s8 %v1095
  %v1097 = vlaneseq
  %v1098 = vshrl.u32 %v1097, 7
  %v1099 = vsub.s32 %v1096, %v1098
  %v1100 = vrot.slane %v1093, %v1099
  %v1102 = vadd.f32 %v1076, %v1100
  %v1103 = vsel %vm290, %v1059, 0
  %1105 = vmatprep.subr.mxu0 0.0
  %1106 = vmatpush1.msra.mxu0 0.0
  %1107 = vmatprep.subr.mxu0 0.0
  %1108 = vmatpush1.msra.mxu0 0.0
  %1109 = vmatprep.subr.mxu0 0.0
  %1110 = vmatpush1.msra.mxu0 0.0
  %1111 = vmatprep.subr.mxu0 0.0
  %1112 = vmatpush1.msra.mxu0 0.0
  %1113 = vmatprep.subr.mxu0 0.0
  %1114 = vmatpush1.msra.mxu0 0.0
  %1115 = vmatprep.subr.mxu0 0.0
  %1116 = vmatpush1.msra.mxu0 0.0
  %1117 = vmatprep.subr.mxu0 0.0
  %1118 = vmatpush1.msra.mxu0 0.0
  %1119 = vmatprep.subr.mxu0 0.0
  %1120 = vmatpush1.msra.mxu0 0.0
  %1121 = vmatprep.subr.mxu0 %v248
  %1122 = vmatpush1.msra.mxu0 %v247
  %1123 = vmatprep.subr.mxu0 %v246
  %1124 = vmatpush1.msra.mxu0 %v245
  %1125 = vmatprep.subr.mxu0 %v244
  %1126 = vmatpush1.msra.mxu0 %v243
  %1127 = vmatprep.subr.mxu0 %v242
  %1128 = vmatpush1.msra.mxu0 %v241
  %1129 = vmatprep.subr.mxu0 %v240
  %1130 = vmatpush1.msra.mxu0 %v239
  %1131 = vmatprep.subr.mxu0 %v238
  %1132 = vmatpush1.msra.mxu0 %v237
  %1133 = vmatprep.subr.mxu0 %v236
  %1134 = vmatpush1.msra.mxu0 %v235
  %1135 = vmatprep.subr.mxu0 %v234
  %1136 = vmatpush1.msra.mxu0 %v233
  %1137 = vmatprep.subr.mxu0 0.0
  %1138 = vmatpush2.msra.mxu0 0.0
  %1139 = vmatprep.subr.mxu0 0.0
  %1140 = vmatpush2.msra.mxu0 0.0
  %1141 = vmatprep.subr.mxu0 0.0
  %1142 = vmatpush2.msra.mxu0 0.0
  %1143 = vmatprep.subr.mxu0 0.0
  %1144 = vmatpush2.msra.mxu0 0.0
  %1145 = vmatprep.subr.mxu0 0.0
  %1146 = vmatpush2.msra.mxu0 0.0
  %1147 = vmatprep.subr.mxu0 0.0
  %1148 = vmatpush2.msra.mxu0 0.0
  %1149 = vmatprep.subr.mxu0 0.0
  %1150 = vmatpush2.msra.mxu0 0.0
  %1151 = vmatprep.subr.mxu0 0.0
  %1152 = vmatpush2.msra.mxu0 0.0
  %1153 = vmatprep.subr.mxu0 0.0
  %1154 = vmatpush2.msra.mxu0 0.0
  %1155 = vmatprep.subr.mxu0 0.0
  %1156 = vmatpush2.msra.mxu0 0.0
  %1157 = vmatprep.subr.mxu0 0.0
  %1158 = vmatpush2.msra.mxu0 0.0
  %1159 = vmatprep.subr.mxu0 0.0
  %1160 = vmatpush2.msra.mxu0 0.0
  %1161 = vmatprep.subr.mxu0 0.0
  %1162 = vmatpush2.msra.mxu0 0.0
  %1163 = vmatprep.subr.mxu0 0.0
  %1164 = vmatpush2.msra.mxu0 0.0
  %1165 = vmatprep.subr.mxu0 0.0
  %1166 = vmatpush2.msra.mxu0 0.0
  %1167 = vmatprep.subr.mxu0 0.0
  %1168 = vmatpush2.msra.mxu0 0.0
  %1169 = vmatprep.mubr.f32.mxu0 0.0
  %1170 = vmatmul.mubr.f32.gmra.mxu0 %v1103
  %v1171 = vpop.f32.mrf.mxu0
  %v1172 = vadd.f32 0.0, %v1171
  %v1173 = vpop.f32.mrf.mxu0
  %v1174 = vadd.f32 0.0, %v1173
  %1175 = vdwg.mxu0
  %v1178 = vcombine.low %v1172, %v1174
  %v1180 = vunpack.c.l.s4 1983009808
  %v1181 = vunpack.c.0.s8 %v1180
  %v1182 = vlaneseq
  %v1183 = vshrl.u32 %v1182, 7
  %v1184 = vsub.s32 %v1181, %v1183
  %v1185 = vrot.slane %v1178, %v1184
  %v1187 = vadd.f32 %v1102, %v1185
  %v1188 = vxor.u32 %v1187, 2147483648
  %v1189 = vmul.f32 %v1188, 1.442695
  %v1190 = vpow.pop %v1189
  %v1191 = vadd.f32 %v1190, 1.0
  %v1192 = vrcp.pop %v1191
  %v1193 = vmul.f32 1.0, %v1192
  %v1195 = vrot.slane %v1187, 2
  %v1197 = vtanh.pop %v1195
  %1198 = vrot.lane.b32.xlu0 %v1187, 64
  %v1199 = vpop.permute.xlu0 %1198
  %v1200 = vrot.slane %v1199, 2
  %v1202 = vxor.u32 %v1200, 2147483648
  %v1203 = vmul.f32 %v1202, 1.442695
  %v1204 = vpow.pop %v1203
  %v1205 = vadd.f32 %v1204, 1.0
  %v1206 = vrcp.pop %v1205
  %v1207 = vmul.f32 1.0, %v1206
  %v1208 = vmul.f32 %v1193, %v1053
  %v1209 = vmul.f32 %v1193, %v1197
  %1211 = vrot.lane.b32.xlu0 %v1209, 64
  %v1212 = vpop.permute.xlu0 %1211
  %v1214 = vadd.f32 %v1208, %v1212
  %v1215 = vtanh.pop %v1214
  %1217 = vrot.lane.b32.xlu0 %v1215, 64
  %v1218 = vpop.permute.xlu0 %1217
  %v1220 = vmul.f32 %v1207, %v1218
  %s1221 = scalar_lea.vmem [#allocation3], 10
  %1222 = vst.msk [vmem:[%s1221] sm:$0x3] %vm410, %v1220
  %v1225 = vunpack.c.l.s4 1983009808
  %v1226 = vunpack.c.0.s8 %v1225
  %v1227 = vlaneseq
  %v1228 = vshrl.u32 %v1227, 7
  %v1229 = vsub.s32 %v1226, %v1228
  %v1230 = vrot.slane %v1220, %v1229
  %1231 = vrot.lane.b32.xlu0 %v1230, 96
  %v1232 = vpop.permute.xlu0 %1231
  %s1234 = scalar_lea.vmem [#allocation4], 4
  %1235 = vst.msk [vmem:[%s1234] sm:$0x3] %vm410, %v1232
  %v1236 = vld [vmem:[%s427] sm:$0xf]
  %v1237 = vld [vmem:[%s425] sm:$0xf]
  %v1238 = vsub.f32 %v1236, %v1237
  %v1241 = vunpack.c.l.s4 1983009808
  %v1242 = vunpack.c.0.s8 %v1241
  %v1243 = vlaneseq
  %v1244 = vshrl.u32 %v1243, 7
  %v1245 = vsub.s32 %v1242, %v1244
  %v1246 = vrot.slane %v1238, %v1245
  %v1247 = vcombine.high %v1246, %v1246
  %v1250 = vmul.f32 %v258, %v1246
  %v1251 = vmul.f32 %v262, %v1247
  %v1254 = vcombine.low %v1250, %v1251
  %v1256 = vunpack.c.l.s4 1983009808
  %v1257 = vunpack.c.0.s8 %v1256
  %v1258 = vlaneseq
  %v1259 = vshrl.u32 %v1258, 7
  %v1260 = vsub.s32 %v1257, %v1259
  %v1261 = vrot.slane %v1254, %v1260
  %v1263 = vadd.f32 %v1237, %v1261
  %v1264 = vsel %vm290, %v1220, 0
  %1266 = vmatprep.subr.mxu0 0.0
  %1267 = vmatpush1.msra.mxu0 0.0
  %1268 = vmatprep.subr.mxu0 0.0
  %1269 = vmatpush1.msra.mxu0 0.0
  %1270 = vmatprep.subr.mxu0 0.0
  %1271 = vmatpush1.msra.mxu0 0.0
  %1272 = vmatprep.subr.mxu0 0.0
  %1273 = vmatpush1.msra.mxu0 0.0
  %1274 = vmatprep.subr.mxu0 0.0
  %1275 = vmatpush1.msra.mxu0 0.0
  %1276 = vmatprep.subr.mxu0 0.0
  %1277 = vmatpush1.msra.mxu0 0.0
  %1278 = vmatprep.subr.mxu0 0.0
  %1279 = vmatpush1.msra.mxu0 0.0
  %1280 = vmatprep.subr.mxu0 0.0
  %1281 = vmatpush1.msra.mxu0 0.0
  %1282 = vmatprep.subr.mxu0 %v248
  %1283 = vmatpush1.msra.mxu0 %v247
  %1284 = vmatprep.subr.mxu0 %v246
  %1285 = vmatpush1.msra.mxu0 %v245
  %1286 = vmatprep.subr.mxu0 %v244
  %1287 = vmatpush1.msra.mxu0 %v243
  %1288 = vmatprep.subr.mxu0 %v242
  %1289 = vmatpush1.msra.mxu0 %v241
  %1290 = vmatprep.subr.mxu0 %v240
  %1291 = vmatpush1.msra.mxu0 %v239
  %1292 = vmatprep.subr.mxu0 %v238
  %1293 = vmatpush1.msra.mxu0 %v237
  %1294 = vmatprep.subr.mxu0 %v236
  %1295 = vmatpush1.msra.mxu0 %v235
  %1296 = vmatprep.subr.mxu0 %v234
  %1297 = vmatpush1.msra.mxu0 %v233
  %1298 = vmatprep.subr.mxu0 0.0
  %1299 = vmatpush2.msra.mxu0 0.0
  %1300 = vmatprep.subr.mxu0 0.0
  %1301 = vmatpush2.msra.mxu0 0.0
  %1302 = vmatprep.subr.mxu0 0.0
  %1303 = vmatpush2.msra.mxu0 0.0
  %1304 = vmatprep.subr.mxu0 0.0
  %1305 = vmatpush2.msra.mxu0 0.0
  %1306 = vmatprep.subr.mxu0 0.0
  %1307 = vmatpush2.msra.mxu0 0.0
  %1308 = vmatprep.subr.mxu0 0.0
  %1309 = vmatpush2.msra.mxu0 0.0
  %1310 = vmatprep.subr.mxu0 0.0
  %1311 = vmatpush2.msra.mxu0 0.0
  %1312 = vmatprep.subr.mxu0 0.0
  %1313 = vmatpush2.msra.mxu0 0.0
  %1314 = vmatprep.subr.mxu0 0.0
  %1315 = vmatpush2.msra.mxu0 0.0
  %1316 = vmatprep.subr.mxu0 0.0
  %1317 = vmatpush2.msra.mxu0 0.0
  %1318 = vmatprep.subr.mxu0 0.0
  %1319 = vmatpush2.msra.mxu0 0.0
  %1320 = vmatprep.subr.mxu0 0.0
  %1321 = vmatpush2.msra.mxu0 0.0
  %1322 = vmatprep.subr.mxu0 0.0
  %1323 = vmatpush2.msra.mxu0 0.0
  %1324 = vmatprep.subr.mxu0 0.0
  %1325 = vmatpush2.msra.mxu0 0.0
  %1326 = vmatprep.subr.mxu0 0.0
  %1327 = vmatpush2.msra.mxu0 0.0
  %1328 = vmatprep.subr.mxu0 0.0
  %1329 = vmatpush2.msra.mxu0 0.0
  %1330 = vmatprep.mubr.f32.mxu0 0.0
  %1331 = vmatmul.mubr.f32.gmra.mxu0 %v1264
  %v1332 = vpop.f32.mrf.mxu0
  %v1333 = vadd.f32 0.0, %v1332
  %v1334 = vpop.f32.mrf.mxu0
  %v1335 = vadd.f32 0.0, %v1334
  %1336 = vdwg.mxu0
  %v1339 = vcombine.low %v1333, %v1335
  %v1341 = vunpack.c.l.s4 1983009808
  %v1342 = vunpack.c.0.s8 %v1341
  %v1343 = vlaneseq
  %v1344 = vshrl.u32 %v1343, 7
  %v1345 = vsub.s32 %v1342, %v1344
  %v1346 = vrot.slane %v1339, %v1345
  %v1348 = vadd.f32 %v1263, %v1346
  %v1349 = vxor.u32 %v1348, 2147483648
  %v1350 = vmul.f32 %v1349, 1.442695
  %v1351 = vpow.pop %v1350
  %v1352 = vadd.f32 %v1351, 1.0
  %v1353 = vrcp.pop %v1352
  %v1354 = vmul.f32 1.0, %v1353
  %v1356 = vrot.slane %v1348, 2
  %v1358 = vtanh.pop %v1356
  %1359 = vrot.lane.b32.xlu0 %v1348, 64
  %v1360 = vpop.permute.xlu0 %1359
  %v1361 = vrot.slane %v1360, 2
  %v1363 = vxor.u32 %v1361, 2147483648
  %v1364 = vmul.f32 %v1363, 1.442695
  %v1365 = vpow.pop %v1364
  %v1366 = vadd.f32 %v1365, 1.0
  %v1367 = vrcp.pop %v1366
  %v1368 = vmul.f32 1.0, %v1367
  %v1369 = vmul.f32 %v1354, %v1214
  %v1370 = vmul.f32 %v1354, %v1358
  %1372 = vrot.lane.b32.xlu0 %v1370, 64
  %v1373 = vpop.permute.xlu0 %1372
  %v1375 = vadd.f32 %v1369, %v1373
  %v1376 = vtanh.pop %v1375
  %1378 = vrot.lane.b32.xlu0 %v1376, 64
  %v1379 = vpop.permute.xlu0 %1378
  %v1381 = vmul.f32 %v1368, %v1379
  %s1382 = scalar_lea.vmem [#allocation3], 12
  %1383 = vst.msk [vmem:[%s1382] sm:$0x3] %vm410, %v1381
  %v1386 = vunpack.c.l.s4 1983009808
  %v1387 = vunpack.c.0.s8 %v1386
  %v1388 = vlaneseq
  %v1389 = vshrl.u32 %v1388, 7
  %v1390 = vsub.s32 %v1387, %v1389
  %v1391 = vrot.slane %v1381, %v1390
  %1392 = vrot.lane.b32.xlu0 %v1391, 96
  %v1393 = vpop.permute.xlu0 %1392
  %s1395 = scalar_lea.vmem [#allocation4], 2
  %1396 = vst.msk [vmem:[%s1395] sm:$0x3] %vm410, %v1393
  %v1397 = vld [vmem:[%s251] sm:$0xf]
  %v1398 = vld [vmem:[#allocation2] sm:$0xf]
  %v1399 = vsub.f32 %v1397, %v1398
  %v1402 = vunpack.c.l.s4 1983009808
  %v1403 = vunpack.c.0.s8 %v1402
  %v1404 = vlaneseq
  %v1405 = vshrl.u32 %v1404, 7
  %v1406 = vsub.s32 %v1403, %v1405
  %v1407 = vrot.slane %v1399, %v1406
  %v1408 = vcombine.high %v1407, %v1407
  %v1411 = vmul.f32 %v258, %v1407
  %v1412 = vmul.f32 %v262, %v1408
  %v1415 = vcombine.low %v1411, %v1412
  %v1417 = vunpack.c.l.s4 1983009808
  %v1418 = vunpack.c.0.s8 %v1417
  %v1419 = vlaneseq
  %v1420 = vshrl.u32 %v1419, 7
  %v1421 = vsub.s32 %v1418, %v1420
  %v1422 = vrot.slane %v1415, %v1421
  %v1424 = vadd.f32 %v1398, %v1422
  %v1425 = vsel %vm290, %v1381, 0
  %1427 = vmatprep.subr.mxu0 0.0
  %1428 = vmatpush1.msra.mxu0 0.0
  %1429 = vmatprep.subr.mxu0 0.0
  %1430 = vmatpush1.msra.mxu0 0.0
  %1431 = vmatprep.subr.mxu0 0.0
  %1432 = vmatpush1.msra.mxu0 0.0
  %1433 = vmatprep.subr.mxu0 0.0
  %1434 = vmatpush1.msra.mxu0 0.0
  %1435 = vmatprep.subr.mxu0 0.0
  %1436 = vmatpush1.msra.mxu0 0.0
  %1437 = vmatprep.subr.mxu0 0.0
  %1438 = vmatpush1.msra.mxu0 0.0
  %1439 = vmatprep.subr.mxu0 0.0
  %1440 = vmatpush1.msra.mxu0 0.0
  %1441 = vmatprep.subr.mxu0 0.0
  %1442 = vmatpush1.msra.mxu0 0.0
  %1443 = vmatprep.subr.mxu0 %v248
  %1444 = vmatpush1.msra.mxu0 %v247
  %1445 = vmatprep.subr.mxu0 %v246
  %1446 = vmatpush1.msra.mxu0 %v245
  %1447 = vmatprep.subr.mxu0 %v244
  %1448 = vmatpush1.msra.mxu0 %v243
  %1449 = vmatprep.subr.mxu0 %v242
  %1450 = vmatpush1.msra.mxu0 %v241
  %1451 = vmatprep.subr.mxu0 %v240
  %1452 = vmatpush1.msra.mxu0 %v239
  %1453 = vmatprep.subr.mxu0 %v238
  %1454 = vmatpush1.msra.mxu0 %v237
  %1455 = vmatprep.subr.mxu0 %v236
  %1456 = vmatpush1.msra.mxu0 %v235
  %1457 = vmatprep.subr.mxu0 %v234
  %1458 = vmatpush1.msra.mxu0 %v233
  %1459 = vmatprep.subr.mxu0 0.0
  %1460 = vmatpush2.msra.mxu0 0.0
  %1461 = vmatprep.subr.mxu0 0.0
  %1462 = vmatpush2.msra.mxu0 0.0
  %1463 = vmatprep.subr.mxu0 0.0
  %1464 = vmatpush2.msra.mxu0 0.0
  %1465 = vmatprep.subr.mxu0 0.0
  %1466 = vmatpush2.msra.mxu0 0.0
  %1467 = vmatprep.subr.mxu0 0.0
  %1468 = vmatpush2.msra.mxu0 0.0
  %1469 = vmatprep.subr.mxu0 0.0
  %1470 = vmatpush2.msra.mxu0 0.0
  %1471 = vmatprep.subr.mxu0 0.0
  %1472 = vmatpush2.msra.mxu0 0.0
  %1473 = vmatprep.subr.mxu0 0.0
  %1474 = vmatpush2.msra.mxu0 0.0
  %1475 = vmatprep.subr.mxu0 0.0
  %1476 = vmatpush2.msra.mxu0 0.0
  %1477 = vmatprep.subr.mxu0 0.0
  %1478 = vmatpush2.msra.mxu0 0.0
  %1479 = vmatprep.subr.mxu0 0.0
  %1480 = vmatpush2.msra.mxu0 0.0
  %1481 = vmatprep.subr.mxu0 0.0
  %1482 = vmatpush2.msra.mxu0 0.0
  %1483 = vmatprep.subr.mxu0 0.0
  %1484 = vmatpush2.msra.mxu0 0.0
  %1485 = vmatprep.subr.mxu0 0.0
  %1486 = vmatpush2.msra.mxu0 0.0
  %1487 = vmatprep.subr.mxu0 0.0
  %1488 = vmatpush2.msra.mxu0 0.0
  %1489 = vmatprep.subr.mxu0 0.0
  %1490 = vmatpush2.msra.mxu0 0.0
  %1491 = vmatprep.mubr.f32.mxu0 0.0
  %1492 = vmatmul.mubr.f32.gmra.mxu0 %v1425
  %v1493 = vpop.f32.mrf.mxu0
  %v1494 = vadd.f32 0.0, %v1493
  %v1495 = vpop.f32.mrf.mxu0
  %v1496 = vadd.f32 0.0, %v1495
  %1497 = vdwg.mxu0
  %v1500 = vcombine.low %v1494, %v1496
  %v1502 = vunpack.c.l.s4 1983009808
  %v1503 = vunpack.c.0.s8 %v1502
  %v1504 = vlaneseq
  %v1505 = vshrl.u32 %v1504, 7
  %v1506 = vsub.s32 %v1503, %v1505
  %v1507 = vrot.slane %v1500, %v1506
  %v1509 = vadd.f32 %v1424, %v1507
  %v1510 = vxor.u32 %v1509, 2147483648
  %v1511 = vmul.f32 %v1510, 1.442695
  %v1512 = vpow.pop %v1511
  %v1513 = vadd.f32 %v1512, 1.0
  %v1514 = vrcp.pop %v1513
  %v1515 = vmul.f32 1.0, %v1514
  %v1517 = vrot.slane %v1509, 2
  %v1519 = vtanh.pop %v1517
  %1520 = vrot.lane.b32.xlu0 %v1509, 64
  %v1521 = vpop.permute.xlu0 %1520
  %v1522 = vrot.slane %v1521, 2
  %v1524 = vxor.u32 %v1522, 2147483648
  %v1525 = vmul.f32 %v1524, 1.442695
  %v1526 = vpow.pop %v1525
  %v1527 = vadd.f32 %v1526, 1.0
  %v1528 = vrcp.pop %v1527
  %v1529 = vmul.f32 1.0, %v1528
  %v1530 = vmul.f32 %v1515, %v1375
  %v1531 = vmul.f32 %v1515, %v1519
  %1533 = vrot.lane.b32.xlu0 %v1531, 64
  %v1534 = vpop.permute.xlu0 %1533
  %v1536 = vadd.f32 %v1530, %v1534
  %v1537 = vtanh.pop %v1536
  %1539 = vrot.lane.b32.xlu0 %v1537, 64
  %v1540 = vpop.permute.xlu0 %1539
  %v1542 = vmul.f32 %v1529, %v1540
  %s1543 = scalar_lea.vmem [#allocation3], 14
  %1544 = vst.msk [vmem:[%s1543] sm:$0x3] %vm410, %v1542
  %v1547 = vunpack.c.l.s4 1983009808
  %v1548 = vunpack.c.0.s8 %v1547
  %v1549 = vlaneseq
  %v1550 = vshrl.u32 %v1549, 7
  %v1551 = vsub.s32 %v1548, %v1550
  %v1552 = vrot.slane %v1542, %v1551
  %1553 = vrot.lane.b32.xlu0 %v1552, 96
  %v1554 = vpop.permute.xlu0 %1553
  %1556 = vst.msk [vmem:[#allocation4] sm:$0x3] %vm410, %v1554
  %v1557 = vld [vmem:[#allocation3] sm:$0x3]
  %v1558 = vld [vmem:[#allocation3 + $0x2] sm:$0x3]
  %v1559 = vld [vmem:[#allocation3 + $0x4] sm:$0x3]
  %v1560 = vld [vmem:[#allocation3 + $0x6] sm:$0x3]
  %v1561 = vld [vmem:[#allocation3 + $0x8] sm:$0x3]
  %v1562 = vld [vmem:[#allocation3 + $0xa] sm:$0x3]
  %v1563 = vld [vmem:[#allocation3 + $0xc] sm:$0x3]
  %v1564 = vld [vmem:[#allocation3 + $0xe] sm:$0x3]
  %v1565 = vld [vmem:[%s5] sm:$0xff]
  %v1566 = vld [vmem:[%s5 + $0x8] sm:$0xff]
  %v1567 = vld [vmem:[%s5 + $0x10] sm:$0xff]
  %v1568 = vld [vmem:[%s5 + $0x18] sm:$0xff]
  %v1569 = vld [vmem:[#allocation4] sm:$0x3]
  %v1570 = vld [vmem:[#allocation4 + $0x2] sm:$0x3]
  %v1571 = vld [vmem:[#allocation4 + $0x4] sm:$0x3]
  %v1572 = vld [vmem:[#allocation4 + $0x6] sm:$0x3]
  %v1573 = vld [vmem:[#allocation4 + $0x8] sm:$0x3]
  %v1574 = vld [vmem:[#allocation4 + $0xa] sm:$0x3]
  %v1575 = vld [vmem:[#allocation4 + $0xc] sm:$0x3]
  %v1576 = vld [vmem:[#allocation4 + $0xe] sm:$0x3]
  %v1577 = vld [vmem:[%s6] sm:$0xff]
  %v1578 = vld [vmem:[%s6 + $0x8] sm:$0xff]
  %v1579 = vld [vmem:[%s6 + $0x10] sm:$0xff]
  %v1580 = vld [vmem:[%s6 + $0x18] sm:$0xff]
  %v1589 = vcombine.low %v1569, %v1570
  %v1590 = vcombine.low %v1571, %v1572
  %v1592 = vunpack.c.l.s4 1983009808
  %v1593 = vunpack.c.0.s8 %v1592
  %v1594 = vlaneseq
  %v1595 = vshrl.u32 %v1594, 7
  %v1596 = vsub.s32 %v1593, %v1595
  %v1597 = vrot.slane %v1589, %v1596
  %v1599 = vunpack.c.l.s4 1983009808
  %v1600 = vunpack.c.0.s8 %v1599
  %v1601 = vlaneseq
  %v1602 = vshrl.u32 %v1601, 7
  %v1603 = vsub.s32 %v1600, %v1602
  %v1604 = vrot.slane %v1590, %v1603
  %v1605 = vcombine.low %v1597, %v1604
  %v1606 = vcombine.low %v1573, %v1574
  %v1607 = vcombine.low %v1575, %v1576
  %v1609 = vunpack.c.l.s4 1983009808
  %v1610 = vunpack.c.0.s8 %v1609
  %v1611 = vlaneseq
  %v1612 = vshrl.u32 %v1611, 7
  %v1613 = vsub.s32 %v1610, %v1612
  %v1614 = vrot.slane %v1606, %v1613
  %v1616 = vunpack.c.l.s4 1983009808
  %v1617 = vunpack.c.0.s8 %v1616
  %v1618 = vlaneseq
  %v1619 = vshrl.u32 %v1618, 7
  %v1620 = vsub.s32 %v1617, %v1619
  %v1621 = vrot.slane %v1607, %v1620
  %v1622 = vcombine.low %v1614, %v1621
  %vm1623 = vcmask 261120
  %v1624 = vsel %vm1623, %v1605, 0
  %v1626 = vsel %vm1623, %v1622, 0
  %1628 = vmatprep.subr.mxu0 0.0
  %1629 = vmatpush1.msra.mxu0 0.0
  %1630 = vmatprep.subr.mxu0 0.0
  %1631 = vmatpush1.msra.mxu0 0.0
  %1632 = vmatprep.subr.mxu0 0.0
  %1633 = vmatpush1.msra.mxu0 0.0
  %1634 = vmatprep.subr.mxu0 0.0
  %1635 = vmatpush1.msra.mxu0 0.0
  %1636 = vmatprep.subr.mxu0 0.0
  %1637 = vmatpush1.msra.mxu0 0.0
  %1638 = vmatprep.subr.mxu0 0.0
  %1639 = vmatpush1.msra.mxu0 0.0
  %1640 = vmatprep.subr.mxu0 0.0
  %1641 = vmatpush1.msra.mxu0 0.0
  %1642 = vmatprep.subr.mxu0 0.0
  %1643 = vmatpush1.msra.mxu0 0.0
  %1644 = vmatprep.subr.mxu0 0.0
  %1645 = vmatpush1.msra.mxu0 0.0
  %1646 = vmatprep.subr.mxu0 0.0
  %1647 = vmatpush1.msra.mxu0 0.0
  %1648 = vmatprep.subr.mxu0 0.0
  %1649 = vmatpush1.msra.mxu0 0.0
  %1650 = vmatprep.subr.mxu0 0.0
  %1651 = vmatpush1.msra.mxu0 0.0
  %1652 = vmatprep.subr.mxu0 0.0
  %1653 = vmatpush1.msra.mxu0 %v1580
  %1654 = vmatprep.subr.mxu0 0.0
  %1655 = vmatpush1.msra.mxu0 %v1579
  %1656 = vmatprep.subr.mxu0 0.0
  %1657 = vmatpush1.msra.mxu0 %v1578
  %1658 = vmatprep.subr.mxu0 0.0
  %1659 = vmatpush1.msra.mxu0 %v1577
  %1660 = vmatprep.subr.mxu0 0.0
  %1661 = vmatpush2.msra.mxu0 0.0
  %1662 = vmatprep.subr.mxu0 0.0
  %1663 = vmatpush2.msra.mxu0 0.0
  %1664 = vmatprep.subr.mxu0 0.0
  %1665 = vmatpush2.msra.mxu0 0.0
  %1666 = vmatprep.subr.mxu0 0.0
  %1667 = vmatpush2.msra.mxu0 0.0
  %1668 = vmatprep.subr.mxu0 0.0
  %1669 = vmatpush2.msra.mxu0 0.0
  %1670 = vmatprep.subr.mxu0 0.0
  %1671 = vmatpush2.msra.mxu0 0.0
  %1672 = vmatprep.subr.mxu0 0.0
  %1673 = vmatpush2.msra.mxu0 0.0
  %1674 = vmatprep.subr.mxu0 0.0
  %1675 = vmatpush2.msra.mxu0 0.0
  %1676 = vmatprep.subr.mxu0 0.0
  %1677 = vmatpush2.msra.mxu0 0.0
  %1678 = vmatprep.subr.mxu0 0.0
  %1679 = vmatpush2.msra.mxu0 0.0
  %1680 = vmatprep.subr.mxu0 0.0
  %1681 = vmatpush2.msra.mxu0 0.0
  %1682 = vmatprep.subr.mxu0 0.0
  %1683 = vmatpush2.msra.mxu0 0.0
  %1684 = vmatprep.subr.mxu0 0.0
  %1685 = vmatpush2.msra.mxu0 0.0
  %1686 = vmatprep.subr.mxu0 0.0
  %1687 = vmatpush2.msra.mxu0 0.0
  %1688 = vmatprep.subr.mxu0 0.0
  %1689 = vmatpush2.msra.mxu0 0.0
  %1690 = vmatprep.subr.mxu0 0.0
  %1691 = vmatpush2.msra.mxu0 0.0
  %1692 = vmatprep.mubr.f32.mxu0 0.0
  %1693 = vmatmul.mubr.f32.gmra.mxu0 %v1624
  %v1694 = vpop.f32.mrf.mxu0
  %v1695 = vadd.f32 0.0, %v1694
  %v1696 = vpop.f32.mrf.mxu0
  %1697 = vmatprep.mubr.f32.mxu0 0.0
  %1698 = vmatmul.mubr.f32.gmra.mxu0 %v1626
  %v1699 = vpop.f32.mrf.mxu0
  %v1700 = vadd.f32 0.0, %v1699
  %v1701 = vpop.f32.mrf.mxu0
  %1702 = vdwg.mxu0
  %v1711 = vcombine.low %v1557, %v1558
  %v1712 = vcombine.low %v1559, %v1560
  %v1714 = vunpack.c.l.s4 1983009808
  %v1715 = vunpack.c.0.s8 %v1714
  %v1716 = vlaneseq
  %v1717 = vshrl.u32 %v1716, 7
  %v1718 = vsub.s32 %v1715, %v1717
  %v1719 = vrot.slane %v1711, %v1718
  %v1721 = vunpack.c.l.s4 1983009808
  %v1722 = vunpack.c.0.s8 %v1721
  %v1723 = vlaneseq
  %v1724 = vshrl.u32 %v1723, 7
  %v1725 = vsub.s32 %v1722, %v1724
  %v1726 = vrot.slane %v1712, %v1725
  %v1727 = vcombine.low %v1719, %v1726
  %v1728 = vcombine.low %v1561, %v1562
  %v1729 = vcombine.low %v1563, %v1564
  %v1731 = vunpack.c.l.s4 1983009808
  %v1732 = vunpack.c.0.s8 %v1731
  %v1733 = vlaneseq
  %v1734 = vshrl.u32 %v1733, 7
  %v1735 = vsub.s32 %v1732, %v1734
  %v1736 = vrot.slane %v1728, %v1735
  %v1738 = vunpack.c.l.s4 1983009808
  %v1739 = vunpack.c.0.s8 %v1738
  %v1740 = vlaneseq
  %v1741 = vshrl.u32 %v1740, 7
  %v1742 = vsub.s32 %v1739, %v1741
  %v1743 = vrot.slane %v1729, %v1742
  %v1744 = vcombine.low %v1736, %v1743
  %v1745 = vsel %vm1623, %v1727, 0
  %v1747 = vsel %vm1623, %v1744, 0
  %1749 = vmatprep.subr.mxu0 0.0
  %1750 = vmatpush1.msra.mxu0 0.0
  %1751 = vmatprep.subr.mxu0 0.0
  %1752 = vmatpush1.msra.mxu0 0.0
  %1753 = vmatprep.subr.mxu0 0.0
  %1754 = vmatpush1.msra.mxu0 0.0
  %1755 = vmatprep.subr.mxu0 0.0
  %1756 = vmatpush1.msra.mxu0 0.0
  %1757 = vmatprep.subr.mxu0 0.0
  %1758 = vmatpush1.msra.mxu0 0.0
  %1759 = vmatprep.subr.mxu0 0.0
  %1760 = vmatpush1.msra.mxu0 0.0
  %1761 = vmatprep.subr.mxu0 0.0
  %1762 = vmatpush1.msra.mxu0 0.0
  %1763 = vmatprep.subr.mxu0 0.0
  %1764 = vmatpush1.msra.mxu0 0.0
  %1765 = vmatprep.subr.mxu0 0.0
  %1766 = vmatpush1.msra.mxu0 0.0
  %1767 = vmatprep.subr.mxu0 0.0
  %1768 = vmatpush1.msra.mxu0 0.0
  %1769 = vmatprep.subr.mxu0 0.0
  %1770 = vmatpush1.msra.mxu0 0.0
  %1771 = vmatprep.subr.mxu0 0.0
  %1772 = vmatpush1.msra.mxu0 0.0
  %1773 = vmatprep.subr.mxu0 0.0
  %1774 = vmatpush1.msra.mxu0 %v1568
  %1775 = vmatprep.subr.mxu0 0.0
  %1776 = vmatpush1.msra.mxu0 %v1567
  %1777 = vmatprep.subr.mxu0 0.0
  %1778 = vmatpush1.msra.mxu0 %v1566
  %1779 = vmatprep.subr.mxu0 0.0
  %1780 = vmatpush1.msra.mxu0 %v1565
  %1781 = vmatprep.subr.mxu0 0.0
  %1782 = vmatpush2.msra.mxu0 0.0
  %1783 = vmatprep.subr.mxu0 0.0
  %1784 = vmatpush2.msra.mxu0 0.0
  %1785 = vmatprep.subr.mxu0 0.0
  %1786 = vmatpush2.msra.mxu0 0.0
  %1787 = vmatprep.subr.mxu0 0.0
  %1788 = vmatpush2.msra.mxu0 0.0
  %1789 = vmatprep.subr.mxu0 0.0
  %1790 = vmatpush2.msra.mxu0 0.0
  %1791 = vmatprep.subr.mxu0 0.0
  %1792 = vmatpush2.msra.mxu0 0.0
  %1793 = vmatprep.subr.mxu0 0.0
  %1794 = vmatpush2.msra.mxu0 0.0
  %1795 = vmatprep.subr.mxu0 0.0
  %1796 = vmatpush2.msra.mxu0 0.0
  %1797 = vmatprep.subr.mxu0 0.0
  %1798 = vmatpush2.msra.mxu0 0.0
  %1799 = vmatprep.subr.mxu0 0.0
  %1800 = vmatpush2.msra.mxu0 0.0
  %1801 = vmatprep.subr.mxu0 0.0
  %1802 = vmatpush2.msra.mxu0 0.0
  %1803 = vmatprep.subr.mxu0 0.0
  %1804 = vmatpush2.msra.mxu0 0.0
  %1805 = vmatprep.subr.mxu0 0.0
  %1806 = vmatpush2.msra.mxu0 0.0
  %1807 = vmatprep.subr.mxu0 0.0
  %1808 = vmatpush2.msra.mxu0 0.0
  %1809 = vmatprep.subr.mxu0 0.0
  %1810 = vmatpush2.msra.mxu0 0.0
  %1811 = vmatprep.subr.mxu0 0.0
  %1812 = vmatpush2.msra.mxu0 0.0
  %1813 = vmatprep.mubr.f32.mxu0 0.0
  %1814 = vmatmul.mubr.f32.gmra.mxu0 %v1745
  %v1815 = vpop.f32.mrf.mxu0
  %v1816 = vadd.f32 %v1695, %v1815
  %v1817 = vpop.f32.mrf.mxu0
  %1818 = vmatprep.mubr.f32.mxu0 0.0
  %1819 = vmatmul.mubr.f32.gmra.mxu0 %v1747
  %v1820 = vpop.f32.mrf.mxu0
  %v1821 = vadd.f32 %v1700, %v1820
  %v1822 = vpop.f32.mrf.mxu0
  %1823 = vdwg.mxu0
  %v1824 = vld [vmem:[%s7] sm:$0x1]
  %v1826 = vlaneseq
  %v1827 = vshrl.u32 %v1826, 7
  %v1828 = vsub.s32 0, %v1827
  %v1829 = vrot.slane %v1824, %v1828
  %v1831 = vadd.f32 %v1816, %v1829
  %v1832 = vadd.f32 %v1821, %v1829
  %v1835 = vcombine.high %v1831, %v1831
  %v1837 = vunpack.c.l.s4 1983009808
  %v1838 = vunpack.c.0.s8 %v1837
  %v1839 = vlaneseq
  %v1840 = vshrl.u32 %v1839, 7
  %v1841 = vsub.s32 %v1838, %v1840
  %v1842 = vrot.slane %v1831, %v1841
  %v1844 = vunpack.c.l.s4 1983009808
  %v1845 = vunpack.c.0.s8 %v1844
  %v1846 = vlaneseq
  %v1847 = vshrl.u32 %v1846, 7
  %v1848 = vsub.s32 %v1845, %v1847
  %v1849 = vrot.slane %v1835, %v1848
  %v1850 = vcombine.high %v1842, %v1842
  %v1851 = vcombine.high %v1849, %v1849
  %v1852 = vcombine.high %v1832, %v1832
  %v1854 = vunpack.c.l.s4 1983009808
  %v1855 = vunpack.c.0.s8 %v1854
  %v1856 = vlaneseq
  %v1857 = vshrl.u32 %v1856, 7
  %v1858 = vsub.s32 %v1855, %v1857
  %v1859 = vrot.slane %v1832, %v1858
  %v1861 = vunpack.c.l.s4 1983009808
  %v1862 = vunpack.c.0.s8 %v1861
  %v1863 = vlaneseq
  %v1864 = vshrl.u32 %v1863, 7
  %v1865 = vsub.s32 %v1862, %v1864
  %v1866 = vrot.slane %v1852, %v1865
  %v1867 = vcombine.high %v1859, %v1859
  %v1868 = vcombine.high %v1866, %v1866
  %vm1877 = vcmask 25600
  %1878 = vst.msk [vmem:[%s8] sm:$0x3] %vm1877, %v1842
  %1879 = vst.msk [vmem:[%s8 + $0x2] sm:$0x3] %vm1877, %v1850
  %1880 = vst.msk [vmem:[%s8 + $0x4] sm:$0x3] %vm1877, %v1849
  %1881 = vst.msk [vmem:[%s8 + $0x6] sm:$0x3] %vm1877, %v1851
  %1882 = vst.msk [vmem:[%s8 + $0x8] sm:$0x3] %vm1877, %v1859
  %1883 = vst.msk [vmem:[%s8 + $0xa] sm:$0x3] %vm1877, %v1867
  %1884 = vst.msk [vmem:[%s8 + $0xc] sm:$0x3] %vm1877, %v1866
  %1885 = vst.msk [vmem:[%s8 + $0xe] sm:$0x3] %vm1877, %v1868
  // Predicated region
  $region34: #{rna_pair_lstm_forward.1} parent=0 // pred_check
    _
  $region35: #{rna_pair_lstm_forward.1} parent=0 // pred_check_branch
    %1887 = sbr.rel (0) target = $region37
  $region36: #{rna_pair_lstm_forward.1} parent=0 // pred_region
    _
  $region37: #{rna_pair_lstm_forward.1} parent=0 // pred_fallthru
    _
  // Predicated region
  $region38: #{rna_pair_lstm_forward.1} parent=0 // pred_check
    _
  $region39: #{rna_pair_lstm_forward.1} parent=0 // pred_check_branch
    %1889 = sbr.rel (0) target = $region41
  $region40: #{rna_pair_lstm_forward.1} parent=0 // pred_region
    _
  $region41: #{rna_pair_lstm_forward.1} parent=0 // pred_fallthru
    _

</llo_original>
